<compile_context>
chip_gen: v6e
topology: v6e:2x2x1
jax: 0.10.0
libtpu: 0.0.40
codegen_flags: <defaults>
</compile_context>

<pallas_src>
import functools

import jax
import jax.numpy as jnp
from jax.experimental import pallas as pl
from jax.experimental.pallas import tpu as pltpu


LN_EPS = 1e-12  # BERT default


def _layernorm(h, g, b):
    """LayerNorm over the last axis, f32 math."""
    mu = jnp.mean(h, axis=-1, keepdims=True)
    d = h - mu
    var = jnp.mean(d * d, axis=-1, keepdims=True)
    return d * jax.lax.rsqrt(var + LN_EPS) * g + b


# ----------------------------- Pallas kernel -----------------------------

def _encoder_kernel(x_ref, mask_ref, eg_ref, eb_ref,
                    wqkv_ref, bqkv_ref, wo_ref, bo_ref, g1_ref, b1_ref,
                    wi_ref, bi_ref, wf_ref, bf_ref, g2_ref, b2_ref,
                    o_ref, *, num_heads, head_dim, hidden, scale):
    """One grid step = one (batch element, layer) pair.

    The (S, H) layer state is output-resident in VMEM across the layer axis
    (output block index depends only on the batch axis). Layer 0 seeds it
    with the embedding LayerNorm; every step reads the resident state,
    applies one full transformer layer, and writes it back.
    """
    layer = pl.program_id(1)

    @pl.when(layer == 0)
    def _():
        # Embedding LayerNorm fused into the first layer step.
        o_ref[0] = _layernorm(x_ref[0], eg_ref[...], eb_ref[...])

    x = o_ref[0]                                               # (S, H) state
    mask = mask_ref[0]                                         # (1, S) additive

    # ---- self-attention block ----
    qkv = (jnp.dot(x, wqkv_ref[0], preferred_element_type=jnp.float32)
           + bqkv_ref[0])                                      # (S, 3H)
    wo = wo_ref[0]                                             # (H, H)

    s_rows = x.shape[0]
    acc = jnp.zeros((s_rows, hidden), jnp.float32)
    for h in range(num_heads):
        lo = h * head_dim
        q = qkv[:, lo:lo + head_dim] * scale                   # scale q, not S*S
        k = qkv[:, hidden + lo:hidden + lo + head_dim]
        v = qkv[:, 2 * hidden + lo:2 * hidden + lo + head_dim]
        # scores = q @ k^T via dot_general contracting dims — no transpose.
        scores = jax.lax.dot_general(
            q, k, (((1,), (1,)), ((), ())),
            preferred_element_type=jnp.float32)                # (S, S)
        probs = jax.nn.softmax(scores + mask, axis=-1)         # f32 softmax
        ctx_h = jnp.dot(probs, v, preferred_element_type=jnp.float32)
        # Fold the head's slice of the output projection in directly
        # (block-matmul identity) — avoids concatenating heads.
        acc = acc + jnp.dot(ctx_h, wo[lo:lo + head_dim, :],
                            preferred_element_type=jnp.float32)

    attn = _layernorm(acc + bo_ref[0] + x, g1_ref[0], b1_ref[0])

    # ---- feed-forward block ----
    inter = (jnp.dot(attn, wi_ref[0], preferred_element_type=jnp.float32)
             + bi_ref[0])
    # TODO(synk): use exact erf GELU ("gelu") if the encoder config asks for
    # it; tanh approximation ("gelu_new") kept for guaranteed TPU lowering.
    inter = jax.nn.gelu(inter)
    ffn = (jnp.dot(inter, wf_ref[0], preferred_element_type=jnp.float32)
           + bf_ref[0])
    o_ref[0] = _layernorm(ffn + attn, g2_ref[0], b2_ref[0])


# ----------------------------- kernel wrapper -----------------------------

def bert_encoder(params, input_ids, attention_mask, cfg):
    B, S = input_ids.shape
    H = cfg["hidden"]
    I = cfg["intermediate"]
    L = cfg["layers"]

    # Embedding gathers + sum are glue (XLA fuses them); everything else is
    # the single fused Pallas encoder kernel.
    # token_type_ids default to 0 (matches HF when none are passed).
    emb = (params["word_emb"][input_ids]
           + params["pos_emb"][jnp.arange(S)][None, :, :]
           + params["type_emb"][0][None, None, :]).astype(jnp.float32)

    # Additive attention mask, HF convention, kept in f32: (B, 1, S).
    mask_add = (1.0 - attention_mask.astype(jnp.float32))[:, None, :] * -1e9

    enc = params["enc"]
    kern = functools.partial(
        _encoder_kernel, num_heads=cfg["heads"], head_dim=cfg["head_dim"],
        hidden=H, scale=1.0 / float(cfg["head_dim"]) ** 0.5)

    return pl.pallas_call(
        kern,
        out_shape=jax.ShapeDtypeStruct((B, S, H), jnp.float32),
        grid=(B, L),
        in_specs=[
            pl.BlockSpec((1, S, H), lambda b, l: (b, 0, 0)),        # emb
            pl.BlockSpec((1, 1, S), lambda b, l: (b, 0, 0)),        # mask
            pl.BlockSpec((1, H), lambda b, l: (0, 0)),              # emb ln g
            pl.BlockSpec((1, H), lambda b, l: (0, 0)),              # emb ln b
            pl.BlockSpec((1, H, 3 * H), lambda b, l: (l, 0, 0)),    # Wqkv
            pl.BlockSpec((1, 1, 3 * H), lambda b, l: (l, 0, 0)),    # bqkv
            pl.BlockSpec((1, H, H), lambda b, l: (l, 0, 0)),        # Wo
            pl.BlockSpec((1, 1, H), lambda b, l: (l, 0, 0)),        # bo
            pl.BlockSpec((1, 1, H), lambda b, l: (l, 0, 0)),        # ln1 g
            pl.BlockSpec((1, 1, H), lambda b, l: (l, 0, 0)),        # ln1 b
            pl.BlockSpec((1, H, I), lambda b, l: (l, 0, 0)),        # Wi
            pl.BlockSpec((1, 1, I), lambda b, l: (l, 0, 0)),        # bi
            pl.BlockSpec((1, I, H), lambda b, l: (l, 0, 0)),        # Wf
            pl.BlockSpec((1, 1, H), lambda b, l: (l, 0, 0)),        # bf
            pl.BlockSpec((1, 1, H), lambda b, l: (l, 0, 0)),        # ln2 g
            pl.BlockSpec((1, 1, H), lambda b, l: (l, 0, 0)),        # ln2 b
        ],
        out_specs=pl.BlockSpec((1, S, H), lambda b, l: (b, 0, 0)),
        compiler_params=pltpu.CompilerParams(
            dimension_semantics=("parallel", "arbitrary")),
    )(emb, mask_add,
      params["emb_ln_g"].reshape(1, H), params["emb_ln_b"].reshape(1, H),
      enc["wqkv"], enc["bqkv"], enc["wo"], enc["bo"],
      enc["ln1_g"], enc["ln1_b"],
      enc["wi"], enc["bi"], enc["wf"], enc["bf"],
      enc["ln2_g"], enc["ln2_b"])


# ----------------------------- model -----------------------------

def init_params(key, cfg):
    keys = jax.random.split(key, 64)
    it = iter(keys)

    def nrm(shape):
        return (0.02 * jax.random.normal(next(it), shape)).astype(jnp.float32)

    H, I, L = cfg["hidden"], cfg["intermediate"], cfg["layers"]
    params = {
        "word_emb": nrm((cfg["vocab"], H)),
        "pos_emb": nrm((cfg["max_pos"], H)),
        "type_emb": nrm((2, H)),
        "emb_ln_g": jnp.ones((H,), jnp.float32),
        "emb_ln_b": jnp.zeros((H,), jnp.float32),
        # Per-layer weights stacked along a leading L axis so one pallas_call
        # can stream them along the layer grid axis.
        "enc": {
            "wqkv": nrm((L, H, 3 * H)),
            "bqkv": jnp.zeros((L, 1, 3 * H), jnp.float32),
            "wo": nrm((L, H, H)),
            "bo": jnp.zeros((L, 1, H), jnp.float32),
            "ln1_g": jnp.ones((L, 1, H), jnp.float32),
            "ln1_b": jnp.zeros((L, 1, H), jnp.float32),
            "wi": nrm((L, H, I)),
            "bi": jnp.zeros((L, 1, I), jnp.float32),
            "wf": nrm((L, I, H)),
            "bf": jnp.zeros((L, 1, H), jnp.float32),
            "ln2_g": jnp.ones((L, 1, H), jnp.float32),
            "ln2_b": jnp.zeros((L, 1, H), jnp.float32),
        },
        "sub_embed": nrm((cfg["num_subs"], cfg["sub_embed_dim"])),
        "reg_w": nrm((H + cfg["meta_dim"] + cfg["sub_embed_dim"], 2)),
        "reg_b": jnp.zeros((2,), jnp.float32),
    }
    return params


def forward(params, input_ids, attention_mask, meta_feats, sub_ids, cfg):
    hidden = bert_encoder(params, input_ids, attention_mask, cfg)
    cls_emb = hidden[:, 0, :]                      # last_hidden_state[:, 0, :]
    # self.dropout(cls_emb): identity in eval mode.
    sub_emb = params["sub_embed"][sub_ids]         # nn.Embedding lookup (glue)
    x = jnp.concatenate([cls_emb,
                         meta_feats.astype(jnp.float32),
                         sub_emb], axis=-1)
    # Final regressor in plain JAX: the (B, 2) output is far narrower than a
    # lane tile, so a pallas_call launch would cost more than the matmul.
    return jnp.dot(x, params["reg_w"]) + params["reg_b"]   # (B, 2)


# ----------------------------- main -----------------------------

if __name__ == "__main__":
    cfg = dict(vocab=100, hidden=32, heads=2, head_dim=16, intermediate=64,
               layers=2, max_pos=16, num_subs=10, sub_embed_dim=8, meta_dim=6)

    key = jax.random.PRNGKey(0)
    pkey, dkey = jax.random.split(key)
    params = init_params(pkey, cfg)

    B, S = 2, 8
    k1, k2, k3 = jax.random.split(dkey, 3)
    input_ids = jax.random.randint(k1, (B, S), 0, cfg["vocab"])
    attention_mask = jnp.ones((B, S), jnp.int32).at[1, 6:].set(0)  # pad tail
    meta_feats = jax.random.normal(k2, (B, cfg["meta_dim"]), jnp.float32)
    sub_ids = jax.random.randint(k3, (B,), 0, cfg["num_subs"])

    fwd = jax.jit(functools.partial(forward, cfg=cfg))
    out = fwd(params, input_ids, attention_mask, meta_feats, sub_ids)
    out = jax.block_until_ready(out)

    assert out.shape == (B, 2) and out.dtype == jnp.float32
    print("KERNEL_OK")
</pallas_src>

<mosaic_0001>
module attributes {stable_mosaic.version = 11 : i64} {
  func.func @_encoder_kernel(%arg0: i32, %arg1: i32, %arg2: memref<1x8x32xf32, #tpu.memory_space<vmem>>, %arg3: memref<1x1x8xf32, #tpu.memory_space<vmem>>, %arg4: memref<1x32xf32, #tpu.memory_space<vmem>>, %arg5: memref<1x32xf32, #tpu.memory_space<vmem>>, %arg6: memref<1x32x96xf32, #tpu.memory_space<vmem>>, %arg7: memref<1x1x96xf32, #tpu.memory_space<vmem>>, %arg8: memref<1x32x32xf32, #tpu.memory_space<vmem>>, %arg9: memref<1x1x32xf32, #tpu.memory_space<vmem>>, %arg10: memref<1x1x32xf32, #tpu.memory_space<vmem>>, %arg11: memref<1x1x32xf32, #tpu.memory_space<vmem>>, %arg12: memref<1x32x64xf32, #tpu.memory_space<vmem>>, %arg13: memref<1x1x64xf32, #tpu.memory_space<vmem>>, %arg14: memref<1x64x32xf32, #tpu.memory_space<vmem>>, %arg15: memref<1x1x32xf32, #tpu.memory_space<vmem>>, %arg16: memref<1x1x32xf32, #tpu.memory_space<vmem>>, %arg17: memref<1x1x32xf32, #tpu.memory_space<vmem>>, %arg18: memref<1x8x32xf32, #tpu.memory_space<vmem>>) attributes {dimension_semantics = [#tpu.dimension_semantics<parallel>, #tpu.dimension_semantics<arbitrary>], iteration_bounds = array<i64: 2, 2>, scalar_prefetch = 0 : i64, scratch_operands = 0 : i64, tpu.core_type = #tpu.core_type<tc>, window_params = [{transform_indices = @transform_0, window_bounds = array<i64: 1, 8, 32>}, {transform_indices = @transform_1, window_bounds = array<i64: 1, 1, 8>}, {pipeline_mode = #tpu.pipeline_mode<synchronous>, transform_indices = @transform_2, window_bounds = array<i64: 1, 32>}, {pipeline_mode = #tpu.pipeline_mode<synchronous>, transform_indices = @transform_3, window_bounds = array<i64: 1, 32>}, {transform_indices = @transform_4, window_bounds = array<i64: 1, 32, 96>}, {transform_indices = @transform_5, window_bounds = array<i64: 1, 1, 96>}, {transform_indices = @transform_6, window_bounds = array<i64: 1, 32, 32>}, {transform_indices = @transform_7, window_bounds = array<i64: 1, 1, 32>}, {transform_indices = @transform_8, window_bounds = array<i64: 1, 1, 32>}, {transform_indices = @transform_9, window_bounds = array<i64: 1, 1, 32>}, {transform_indices = @transform_10, window_bounds = array<i64: 1, 32, 64>}, {transform_indices = @transform_11, window_bounds = array<i64: 1, 1, 64>}, {transform_indices = @transform_12, window_bounds = array<i64: 1, 64, 32>}, {transform_indices = @transform_13, window_bounds = array<i64: 1, 1, 32>}, {transform_indices = @transform_14, window_bounds = array<i64: 1, 1, 32>}, {transform_indices = @transform_15, window_bounds = array<i64: 1, 1, 32>}, {transform_indices = @transform_16, window_bounds = array<i64: 1, 8, 32>}]} {
    %c0_i32 = arith.constant 0 : i32
    %0 = arith.cmpi eq, %arg1, %c0_i32 : i32
    %1 = arith.extui %0 : i1 to i32
    %c0_i32_0 = arith.constant 0 : i32
    %2 = arith.cmpi ne, %1, %c0_i32_0 : i32
    scf.if %2 {
      %c0_76 = arith.constant 0 : index
      %c0_77 = arith.constant 0 : index
      %c0_78 = arith.constant 0 : index
      %147 = vector.load %arg2[%c0_76, %c0_77, %c0_78] : memref<1x8x32xf32, #tpu.memory_space<vmem>>, vector<1x8x32xf32>
      %148 = vector.shape_cast %147 : vector<1x8x32xf32> to vector<8x32xf32>
      %c0_79 = arith.constant 0 : index
      %c0_80 = arith.constant 0 : index
      %149 = vector.load %arg4[%c0_79, %c0_80] : memref<1x32xf32, #tpu.memory_space<vmem>>, vector<1x32xf32>
      %c0_81 = arith.constant 0 : index
      %c0_82 = arith.constant 0 : index
      %150 = vector.load %arg5[%c0_81, %c0_82] : memref<1x32xf32, #tpu.memory_space<vmem>>, vector<1x32xf32>
      %cst_83 = arith.constant dense<0.000000e+00> : vector<8xf32>
      %151 = vector.multi_reduction <add>, %148, %cst_83 [1] : vector<8x32xf32> to vector<8xf32>
      %152 = vector.shape_cast %151 : vector<8xf32> to vector<8x1xf32>
      %cst_84 = arith.constant 3.200000e+01 : f32
      %153 = vector.broadcast %cst_84 : f32 to vector<8x1xf32>
      %154 = arith.divf %152, %153 : vector<8x1xf32>
      %155 = vector.broadcast %154 : vector<8x1xf32> to vector<8x32xf32>
      %156 = arith.subf %148, %155 : vector<8x32xf32>
      %157 = arith.mulf %156, %156 : vector<8x32xf32>
      %cst_85 = arith.constant dense<0.000000e+00> : vector<8xf32>
      %158 = vector.multi_reduction <add>, %157, %cst_85 [1] : vector<8x32xf32> to vector<8xf32>
      %159 = vector.shape_cast %158 : vector<8xf32> to vector<8x1xf32>
      %cst_86 = arith.constant 3.200000e+01 : f32
      %160 = vector.broadcast %cst_86 : f32 to vector<8x1xf32>
      %161 = arith.divf %159, %160 : vector<8x1xf32>
      %cst_87 = arith.constant 9.99999996E-13 : f32
      %162 = vector.broadcast %cst_87 : f32 to vector<8x1xf32>
      %163 = arith.addf %161, %162 : vector<8x1xf32>
      %164 = math.rsqrt %163 : vector<8x1xf32>
      %165 = vector.broadcast %164 : vector<8x1xf32> to vector<8x32xf32>
      %166 = arith.mulf %156, %165 : vector<8x32xf32>
      %167 = vector.broadcast %149 : vector<1x32xf32> to vector<8x32xf32>
      %168 = arith.mulf %166, %167 : vector<8x32xf32>
      %169 = vector.broadcast %150 : vector<1x32xf32> to vector<8x32xf32>
      %170 = arith.addf %168, %169 : vector<8x32xf32>
      %c0_88 = arith.constant 0 : index
      %c0_89 = arith.constant 0 : index
      %c0_90 = arith.constant 0 : index
      %171 = vector.load %arg18[%c0_88, %c0_89, %c0_90] : memref<1x8x32xf32, #tpu.memory_space<vmem>>, vector<1x8x32xf32>
      %172 = vector.shape_cast %171 : vector<1x8x32xf32> to vector<8x32xf32>
      %173 = vector.shape_cast %170 : vector<8x32xf32> to vector<1x8x32xf32>
      tpu.vector_store %arg18[%c0_88, %c0_89, %c0_90], %173 {strides = array<i32>} : memref<1x8x32xf32, #tpu.memory_space<vmem>>, vector<1x8x32xf32>,
    } else {
    }
    %c0 = arith.constant 0 : index
    %c0_1 = arith.constant 0 : index
    %c0_2 = arith.constant 0 : index
    %3 = vector.load %arg18[%c0, %c0_1, %c0_2] : memref<1x8x32xf32, #tpu.memory_space<vmem>>, vector<1x8x32xf32>
    %4 = vector.shape_cast %3 : vector<1x8x32xf32> to vector<8x32xf32>
    %c0_3 = arith.constant 0 : index
    %c0_4 = arith.constant 0 : index
    %c0_5 = arith.constant 0 : index
    %5 = vector.load %arg3[%c0_3, %c0_4, %c0_5] : memref<1x1x8xf32, #tpu.memory_space<vmem>>, vector<1x1x8xf32>
    %6 = vector.shape_cast %5 : vector<1x1x8xf32> to vector<1x8xf32>
    %c0_6 = arith.constant 0 : index
    %c0_7 = arith.constant 0 : index
    %c0_8 = arith.constant 0 : index
    %7 = vector.load %arg6[%c0_6, %c0_7, %c0_8] : memref<1x32x96xf32, #tpu.memory_space<vmem>>, vector<1x32x96xf32>
    %8 = vector.shape_cast %7 : vector<1x32x96xf32> to vector<32x96xf32>
    %cst = arith.constant dense<0.000000e+00> : vector<8x96xf32>
    %9 = tpu.matmul %4, %8, %cst {dimension_numbers = #tpu.dot_dimension_numbers<[1], [0], [0], [1], [0, 0, 1, 1], [], []>} : vector<8x32xf32>, vector<32x96xf32>, vector<8x96xf32> -> vector<8x96xf32>
    %c0_9 = arith.constant 0 : index
    %c0_10 = arith.constant 0 : index
    %c0_11 = arith.constant 0 : index
    %10 = vector.load %arg7[%c0_9, %c0_10, %c0_11] : memref<1x1x96xf32, #tpu.memory_space<vmem>>, vector<1x1x96xf32>
    %11 = vector.shape_cast %10 : vector<1x1x96xf32> to vector<1x96xf32>
    %12 = vector.broadcast %11 : vector<1x96xf32> to vector<8x96xf32>
    %13 = arith.addf %9, %12 : vector<8x96xf32>
    %c0_12 = arith.constant 0 : index
    %c0_13 = arith.constant 0 : index
    %c0_14 = arith.constant 0 : index
    %14 = vector.load %arg8[%c0_12, %c0_13, %c0_14] : memref<1x32x32xf32, #tpu.memory_space<vmem>>, vector<1x32x32xf32>
    %15 = vector.shape_cast %14 : vector<1x32x32xf32> to vector<32x32xf32>
    %cst_15 = arith.constant 0.000000e+00 : f32
    %16 = vector.broadcast %cst_15 : f32 to vector<8x32xf32>
    %17 = vector.extract_strided_slice %13 {offsets = [0, 0], sizes = [8, 16], strides = [1, 1]} : vector<8x96xf32> to vector<8x16xf32>
    %cst_16 = arith.constant 2.500000e-01 : f32
    %18 = vector.broadcast %cst_16 : f32 to vector<8x16xf32>
    %19 = arith.mulf %17, %18 : vector<8x16xf32>
    %20 = vector.extract_strided_slice %13 {offsets = [0, 32], sizes = [8, 16], strides = [1, 1]} : vector<8x96xf32> to vector<8x16xf32>
    %21 = vector.extract_strided_slice %13 {offsets = [0, 64], sizes = [8, 16], strides = [1, 1]} : vector<8x96xf32> to vector<8x16xf32>
    %cst_17 = arith.constant dense<0.000000e+00> : vector<8x8xf32>
    %22 = tpu.matmul %19, %20, %cst_17 {dimension_numbers = #tpu.dot_dimension_numbers<[1], [1], [0], [0], [0, 0, 1, 0], [], []>} : vector<8x16xf32>, vector<8x16xf32>, vector<8x8xf32> -> vector<8x8xf32>
    %23 = vector.broadcast %6 : vector<1x8xf32> to vector<8x8xf32>
    %24 = arith.addf %22, %23 : vector<8x8xf32>
    %cst_18 = arith.constant dense<0xFF800000> : vector<8xf32>
    %25 = vector.multi_reduction <maximumf>, %24, %cst_18 [1] : vector<8x8xf32> to vector<8xf32>
    %cst_19 = arith.constant 0xFF800000 : f32
    %26 = vector.broadcast %cst_19 : f32 to vector<8xf32>
    %27 = arith.maximumf %26, %25 : vector<8xf32>
    %28 = vector.shape_cast %27 : vector<8xf32> to vector<8x1xf32>
    %29 = vector.broadcast %28 : vector<8x1xf32> to vector<8x8xf32>
    %30 = arith.subf %24, %29 : vector<8x8xf32>
    %31 = math.exp %30 : vector<8x8xf32>
    %cst_20 = arith.constant dense<0.000000e+00> : vector<8xf32>
    %32 = vector.multi_reduction <add>, %31, %cst_20 [1] : vector<8x8xf32> to vector<8xf32>
    %33 = vector.shape_cast %32 : vector<8xf32> to vector<8x1xf32>
    %34 = vector.broadcast %33 : vector<8x1xf32> to vector<8x8xf32>
    %35 = arith.divf %31, %34 : vector<8x8xf32>
    %cst_21 = arith.constant dense<0.000000e+00> : vector<8x16xf32>
    %36 = tpu.matmul %35, %21, %cst_21 {dimension_numbers = #tpu.dot_dimension_numbers<[1], [0], [0], [1], [0, 0, 1, 1], [], []>} : vector<8x8xf32>, vector<8x16xf32>, vector<8x16xf32> -> vector<8x16xf32>
    %37 = vector.extract_strided_slice %15 {offsets = [0, 0], sizes = [16, 32], strides = [1, 1]} : vector<32x32xf32> to vector<16x32xf32>
    %cst_22 = arith.constant dense<0.000000e+00> : vector<8x32xf32>
    %38 = tpu.matmul %36, %37, %cst_22 {dimension_numbers = #tpu.dot_dimension_numbers<[1], [0], [0], [1], [0, 0, 1, 1], [], []>} : vector<8x16xf32>, vector<16x32xf32>, vector<8x32xf32> -> vector<8x32xf32>
    %39 = arith.addf %16, %38 : vector<8x32xf32>
    %40 = vector.extract_strided_slice %13 {offsets = [0, 16], sizes = [8, 16], strides = [1, 1]} : vector<8x96xf32> to vector<8x16xf32>
    %cst_23 = arith.constant 2.500000e-01 : f32
    %41 = vector.broadcast %cst_23 : f32 to vector<8x16xf32>
    %42 = arith.mulf %40, %41 : vector<8x16xf32>
    %43 = vector.extract_strided_slice %13 {offsets = [0, 48], sizes = [8, 16], strides = [1, 1]} : vector<8x96xf32> to vector<8x16xf32>
    %44 = vector.extract_strided_slice %13 {offsets = [0, 80], sizes = [8, 16], strides = [1, 1]} : vector<8x96xf32> to vector<8x16xf32>
    %cst_24 = arith.constant dense<0.000000e+00> : vector<8x8xf32>
    %45 = tpu.matmul %42, %43, %cst_24 {dimension_numbers = #tpu.dot_dimension_numbers<[1], [1], [0], [0], [0, 0, 1, 0], [], []>} : vector<8x16xf32>, vector<8x16xf32>, vector<8x8xf32> -> vector<8x8xf32>
    %46 = vector.broadcast %6 : vector<1x8xf32> to vector<8x8xf32>
    %47 = arith.addf %45, %46 : vector<8x8xf32>
    %cst_25 = arith.constant dense<0xFF800000> : vector<8xf32>
    %48 = vector.multi_reduction <maximumf>, %47, %cst_25 [1] : vector<8x8xf32> to vector<8xf32>
    %cst_26 = arith.constant 0xFF800000 : f32
    %49 = vector.broadcast %cst_26 : f32 to vector<8xf32>
    %50 = arith.maximumf %49, %48 : vector<8xf32>
    %51 = vector.shape_cast %50 : vector<8xf32> to vector<8x1xf32>
    %52 = vector.broadcast %51 : vector<8x1xf32> to vector<8x8xf32>
    %53 = arith.subf %47, %52 : vector<8x8xf32>
    %54 = math.exp %53 : vector<8x8xf32>
    %cst_27 = arith.constant dense<0.000000e+00> : vector<8xf32>
    %55 = vector.multi_reduction <add>, %54, %cst_27 [1] : vector<8x8xf32> to vector<8xf32>
    %56 = vector.shape_cast %55 : vector<8xf32> to vector<8x1xf32>
    %57 = vector.broadcast %56 : vector<8x1xf32> to vector<8x8xf32>
    %58 = arith.divf %54, %57 : vector<8x8xf32>
    %cst_28 = arith.constant dense<0.000000e+00> : vector<8x16xf32>
    %59 = tpu.matmul %58, %44, %cst_28 {dimension_numbers = #tpu.dot_dimension_numbers<[1], [0], [0], [1], [0, 0, 1, 1], [], []>} : vector<8x8xf32>, vector<8x16xf32>, vector<8x16xf32> -> vector<8x16xf32>
    %60 = vector.extract_strided_slice %15 {offsets = [16, 0], sizes = [16, 32], strides = [1, 1]} : vector<32x32xf32> to vector<16x32xf32>
    %cst_29 = arith.constant dense<0.000000e+00> : vector<8x32xf32>
    %61 = tpu.matmul %59, %60, %cst_29 {dimension_numbers = #tpu.dot_dimension_numbers<[1], [0], [0], [1], [0, 0, 1, 1], [], []>} : vector<8x16xf32>, vector<16x32xf32>, vector<8x32xf32> -> vector<8x32xf32>
    %62 = arith.addf %39, %61 : vector<8x32xf32>
    %c0_30 = arith.constant 0 : index
    %c0_31 = arith.constant 0 : index
    %c0_32 = arith.constant 0 : index
    %63 = vector.load %arg9[%c0_30, %c0_31, %c0_32] : memref<1x1x32xf32, #tpu.memory_space<vmem>>, vector<1x1x32xf32>
    %64 = vector.shape_cast %63 : vector<1x1x32xf32> to vector<1x32xf32>
    %65 = vector.broadcast %64 : vector<1x32xf32> to vector<8x32xf32>
    %66 = arith.addf %62, %65 : vector<8x32xf32>
    %67 = arith.addf %66, %4 : vector<8x32xf32>
    %c0_33 = arith.constant 0 : index
    %c0_34 = arith.constant 0 : index
    %c0_35 = arith.constant 0 : index
    %68 = vector.load %arg10[%c0_33, %c0_34, %c0_35] : memref<1x1x32xf32, #tpu.memory_space<vmem>>, vector<1x1x32xf32>
    %69 = vector.shape_cast %68 : vector<1x1x32xf32> to vector<1x32xf32>
    %c0_36 = arith.constant 0 : index
    %c0_37 = arith.constant 0 : index
    %c0_38 = arith.constant 0 : index
    %70 = vector.load %arg11[%c0_36, %c0_37, %c0_38] : memref<1x1x32xf32, #tpu.memory_space<vmem>>, vector<1x1x32xf32>
    %71 = vector.shape_cast %70 : vector<1x1x32xf32> to vector<1x32xf32>
    %cst_39 = arith.constant dense<0.000000e+00> : vector<8xf32>
    %72 = vector.multi_reduction <add>, %67, %cst_39 [1] : vector<8x32xf32> to vector<8xf32>
    %73 = vector.shape_cast %72 : vector<8xf32> to vector<8x1xf32>
    %cst_40 = arith.constant 3.200000e+01 : f32
    %74 = vector.broadcast %cst_40 : f32 to vector<8x1xf32>
    %75 = arith.divf %73, %74 : vector<8x1xf32>
    %76 = vector.broadcast %75 : vector<8x1xf32> to vector<8x32xf32>
    %77 = arith.subf %67, %76 : vector<8x32xf32>
    %78 = arith.mulf %77, %77 : vector<8x32xf32>
    %cst_41 = arith.constant dense<0.000000e+00> : vector<8xf32>
    %79 = vector.multi_reduction <add>, %78, %cst_41 [1] : vector<8x32xf32> to vector<8xf32>
    %80 = vector.shape_cast %79 : vector<8xf32> to vector<8x1xf32>
    %cst_42 = arith.constant 3.200000e+01 : f32
    %81 = vector.broadcast %cst_42 : f32 to vector<8x1xf32>
    %82 = arith.divf %80, %81 : vector<8x1xf32>
    %cst_43 = arith.constant 9.99999996E-13 : f32
    %83 = vector.broadcast %cst_43 : f32 to vector<8x1xf32>
    %84 = arith.addf %82, %83 : vector<8x1xf32>
    %85 = math.rsqrt %84 : vector<8x1xf32>
    %86 = vector.broadcast %85 : vector<8x1xf32> to vector<8x32xf32>
    %87 = arith.mulf %77, %86 : vector<8x32xf32>
    %88 = vector.broadcast %69 : vector<1x32xf32> to vector<8x32xf32>
    %89 = arith.mulf %87, %88 : vector<8x32xf32>
    %90 = vector.broadcast %71 : vector<1x32xf32> to vector<8x32xf32>
    %91 = arith.addf %89, %90 : vector<8x32xf32>
    %c0_44 = arith.constant 0 : index
    %c0_45 = arith.constant 0 : index
    %c0_46 = arith.constant 0 : index
    %92 = vector.load %arg12[%c0_44, %c0_45, %c0_46] : memref<1x32x64xf32, #tpu.memory_space<vmem>>, vector<1x32x64xf32>
    %93 = vector.shape_cast %92 : vector<1x32x64xf32> to vector<32x64xf32>
    %cst_47 = arith.constant dense<0.000000e+00> : vector<8x64xf32>
    %94 = tpu.matmul %91, %93, %cst_47 {dimension_numbers = #tpu.dot_dimension_numbers<[1], [0], [0], [1], [0, 0, 1, 1], [], []>} : vector<8x32xf32>, vector<32x64xf32>, vector<8x64xf32> -> vector<8x64xf32>
    %c0_48 = arith.constant 0 : index
    %c0_49 = arith.constant 0 : index
    %c0_50 = arith.constant 0 : index
    %95 = vector.load %arg13[%c0_48, %c0_49, %c0_50] : memref<1x1x64xf32, #tpu.memory_space<vmem>>, vector<1x1x64xf32>
    %96 = vector.shape_cast %95 : vector<1x1x64xf32> to vector<1x64xf32>
    %97 = vector.broadcast %96 : vector<1x64xf32> to vector<8x64xf32>
    %98 = arith.addf %94, %97 : vector<8x64xf32>
    %99 = arith.mulf %98, %98 : vector<8x64xf32>
    %100 = arith.mulf %98, %99 : vector<8x64xf32>
    %cst_51 = arith.constant 4.471500e-02 : f32
    %101 = vector.broadcast %cst_51 : f32 to vector<8x64xf32>
    %102 = arith.mulf %101, %100 : vector<8x64xf32>
    %103 = arith.addf %98, %102 : vector<8x64xf32>
    %cst_52 = arith.constant 0.797884583 : f32
    %104 = vector.broadcast %cst_52 : f32 to vector<8x64xf32>
    %105 = arith.mulf %104, %103 : vector<8x64xf32>
    %106 = math.tanh %105 : vector<8x64xf32>
    %cst_53 = arith.constant 1.000000e+00 : f32
    %107 = vector.broadcast %cst_53 : f32 to vector<8x64xf32>
    %108 = arith.addf %107, %106 : vector<8x64xf32>
    %cst_54 = arith.constant 5.000000e-01 : f32
    %109 = vector.broadcast %cst_54 : f32 to vector<8x64xf32>
    %110 = arith.mulf %109, %108 : vector<8x64xf32>
    %111 = arith.mulf %98, %110 : vector<8x64xf32>
    %c0_55 = arith.constant 0 : index
    %c0_56 = arith.constant 0 : index
    %c0_57 = arith.constant 0 : index
    %112 = vector.load %arg14[%c0_55, %c0_56, %c0_57] : memref<1x64x32xf32, #tpu.memory_space<vmem>>, vector<1x64x32xf32>
    %113 = vector.shape_cast %112 : vector<1x64x32xf32> to vector<64x32xf32>
    %cst_58 = arith.constant dense<0.000000e+00> : vector<8x32xf32>
    %114 = tpu.matmul %111, %113, %cst_58 {dimension_numbers = #tpu.dot_dimension_numbers<[1], [0], [0], [1], [0, 0, 1, 1], [], []>} : vector<8x64xf32>, vector<64x32xf32>, vector<8x32xf32> -> vector<8x32xf32>
    %c0_59 = arith.constant 0 : index
    %c0_60 = arith.constant 0 : index
    %c0_61 = arith.constant 0 : index
    %115 = vector.load %arg15[%c0_59, %c0_60, %c0_61] : memref<1x1x32xf32, #tpu.memory_space<vmem>>, vector<1x1x32xf32>
    %116 = vector.shape_cast %115 : vector<1x1x32xf32> to vector<1x32xf32>
    %117 = vector.broadcast %116 : vector<1x32xf32> to vector<8x32xf32>
    %118 = arith.addf %114, %117 : vector<8x32xf32>
    %119 = arith.addf %118, %91 : vector<8x32xf32>
    %c0_62 = arith.constant 0 : index
    %c0_63 = arith.constant 0 : index
    %c0_64 = arith.constant 0 : index
    %120 = vector.load %arg16[%c0_62, %c0_63, %c0_64] : memref<1x1x32xf32, #tpu.memory_space<vmem>>, vector<1x1x32xf32>
    %121 = vector.shape_cast %120 : vector<1x1x32xf32> to vector<1x32xf32>
    %c0_65 = arith.constant 0 : index
    %c0_66 = arith.constant 0 : index
    %c0_67 = arith.constant 0 : index
    %122 = vector.load %arg17[%c0_65, %c0_66, %c0_67] : memref<1x1x32xf32, #tpu.memory_space<vmem>>, vector<1x1x32xf32>
    %123 = vector.shape_cast %122 : vector<1x1x32xf32> to vector<1x32xf32>
    %cst_68 = arith.constant dense<0.000000e+00> : vector<8xf32>
    %124 = vector.multi_reduction <add>, %119, %cst_68 [1] : vector<8x32xf32> to vector<8xf32>
    %125 = vector.shape_cast %124 : vector<8xf32> to vector<8x1xf32>
    %cst_69 = arith.constant 3.200000e+01 : f32
    %126 = vector.broadcast %cst_69 : f32 to vector<8x1xf32>
    %127 = arith.divf %125, %126 : vector<8x1xf32>
    %128 = vector.broadcast %127 : vector<8x1xf32> to vector<8x32xf32>
    %129 = arith.subf %119, %128 : vector<8x32xf32>
    %130 = arith.mulf %129, %129 : vector<8x32xf32>
    %cst_70 = arith.constant dense<0.000000e+00> : vector<8xf32>
    %131 = vector.multi_reduction <add>, %130, %cst_70 [1] : vector<8x32xf32> to vector<8xf32>
    %132 = vector.shape_cast %131 : vector<8xf32> to vector<8x1xf32>
    %cst_71 = arith.constant 3.200000e+01 : f32
    %133 = vector.broadcast %cst_71 : f32 to vector<8x1xf32>
    %134 = arith.divf %132, %133 : vector<8x1xf32>
    %cst_72 = arith.constant 9.99999996E-13 : f32
    %135 = vector.broadcast %cst_72 : f32 to vector<8x1xf32>
    %136 = arith.addf %134, %135 : vector<8x1xf32>
    %137 = math.rsqrt %136 : vector<8x1xf32>
    %138 = vector.broadcast %137 : vector<8x1xf32> to vector<8x32xf32>
    %139 = arith.mulf %129, %138 : vector<8x32xf32>
    %140 = vector.broadcast %121 : vector<1x32xf32> to vector<8x32xf32>
    %141 = arith.mulf %139, %140 : vector<8x32xf32>
    %142 = vector.broadcast %123 : vector<1x32xf32> to vector<8x32xf32>
    %143 = arith.addf %141, %142 : vector<8x32xf32>
    %c0_73 = arith.constant 0 : index
    %c0_74 = arith.constant 0 : index
    %c0_75 = arith.constant 0 : index
    %144 = vector.load %arg18[%c0_73, %c0_74, %c0_75] : memref<1x8x32xf32, #tpu.memory_space<vmem>>, vector<1x8x32xf32>
    %145 = vector.shape_cast %144 : vector<1x8x32xf32> to vector<8x32xf32>
    %146 = vector.shape_cast %143 : vector<8x32xf32> to vector<1x8x32xf32>
    tpu.vector_store %arg18[%c0_73, %c0_74, %c0_75], %146 {strides = array<i32>} : memref<1x8x32xf32, #tpu.memory_space<vmem>>, vector<1x8x32xf32>,
    return
  }
  func.func @transform_0(%arg0: i32, %arg1: i32) -> (i32, i32, i32) {
    %c0_i32 = arith.constant 0 : i32
    %c0_i32_0 = arith.constant 0 : i32
    %c0_i32_1 = arith.constant 0 : i32
    return %arg0, %c0_i32, %c0_i32_0 : i32, i32, i32
  }
  func.func @transform_1(%arg0: i32, %arg1: i32) -> (i32, i32, i32) {
    %c0_i32 = arith.constant 0 : i32
    %c0_i32_0 = arith.constant 0 : i32
    %c0_i32_1 = arith.constant 0 : i32
    return %arg0, %c0_i32, %c0_i32_0 : i32, i32, i32
  }
  func.func @transform_2(%arg0: i32, %arg1: i32) -> (i32, i32) {
    %c0_i32 = arith.constant 0 : i32
    %c0_i32_0 = arith.constant 0 : i32
    %c0_i32_1 = arith.constant 0 : i32
    return %c0_i32, %c0_i32_0 : i32, i32
  }
  func.func @transform_3(%arg0: i32, %arg1: i32) -> (i32, i32) {
    %c0_i32 = arith.constant 0 : i32
    %c0_i32_0 = arith.constant 0 : i32
    %c0_i32_1 = arith.constant 0 : i32
    return %c0_i32, %c0_i32_0 : i32, i32
  }
  func.func @transform_4(%arg0: i32, %arg1: i32) -> (i32, i32, i32) {
    %c0_i32 = arith.constant 0 : i32
    %c0_i32_0 = arith.constant 0 : i32
    %c0_i32_1 = arith.constant 0 : i32
    return %arg1, %c0_i32, %c0_i32_0 : i32, i32, i32
  }
  func.func @transform_5(%arg0: i32, %arg1: i32) -> (i32, i32, i32) {
    %c0_i32 = arith.constant 0 : i32
    %c0_i32_0 = arith.constant 0 : i32
    %c0_i32_1 = arith.constant 0 : i32
    return %arg1, %c0_i32, %c0_i32_0 : i32, i32, i32
  }
  func.func @transform_6(%arg0: i32, %arg1: i32) -> (i32, i32, i32) {
    %c0_i32 = arith.constant 0 : i32
    %c0_i32_0 = arith.constant 0 : i32
    %c0_i32_1 = arith.constant 0 : i32
    return %arg1, %c0_i32, %c0_i32_0 : i32, i32, i32
  }
  func.func @transform_7(%arg0: i32, %arg1: i32) -> (i32, i32, i32) {
    %c0_i32 = arith.constant 0 : i32
    %c0_i32_0 = arith.constant 0 : i32
    %c0_i32_1 = arith.constant 0 : i32
    return %arg1, %c0_i32, %c0_i32_0 : i32, i32, i32
  }
  func.func @transform_8(%arg0: i32, %arg1: i32) -> (i32, i32, i32) {
    %c0_i32 = arith.constant 0 : i32
    %c0_i32_0 = arith.constant 0 : i32
    %c0_i32_1 = arith.constant 0 : i32
    return %arg1, %c0_i32, %c0_i32_0 : i32, i32, i32
  }
  func.func @transform_9(%arg0: i32, %arg1: i32) -> (i32, i32, i32) {
    %c0_i32 = arith.constant 0 : i32
    %c0_i32_0 = arith.constant 0 : i32
    %c0_i32_1 = arith.constant 0 : i32
    return %arg1, %c0_i32, %c0_i32_0 : i32, i32, i32
  }
  func.func @transform_10(%arg0: i32, %arg1: i32) -> (i32, i32, i32) {
    %c0_i32 = arith.constant 0 : i32
    %c0_i32_0 = arith.constant 0 : i32
    %c0_i32_1 = arith.constant 0 : i32
    return %arg1, %c0_i32, %c0_i32_0 : i32, i32, i32
  }
  func.func @transform_11(%arg0: i32, %arg1: i32) -> (i32, i32, i32) {
    %c0_i32 = arith.constant 0 : i32
    %c0_i32_0 = arith.constant 0 : i32
    %c0_i32_1 = arith.constant 0 : i32
    return %arg1, %c0_i32, %c0_i32_0 : i32, i32, i32
  }
  func.func @transform_12(%arg0: i32, %arg1: i32) -> (i32, i32, i32) {
    %c0_i32 = arith.constant 0 : i32
    %c0_i32_0 = arith.constant 0 : i32
    %c0_i32_1 = arith.constant 0 : i32
    return %arg1, %c0_i32, %c0_i32_0 : i32, i32, i32
  }
  func.func @transform_13(%arg0: i32, %arg1: i32) -> (i32, i32, i32) {
    %c0_i32 = arith.constant 0 : i32
    %c0_i32_0 = arith.constant 0 : i32
    %c0_i32_1 = arith.constant 0 : i32
    return %arg1, %c0_i32, %c0_i32_0 : i32, i32, i32
  }
  func.func @transform_14(%arg0: i32, %arg1: i32) -> (i32, i32, i32) {
    %c0_i32 = arith.constant 0 : i32
    %c0_i32_0 = arith.constant 0 : i32
    %c0_i32_1 = arith.constant 0 : i32
    return %arg1, %c0_i32, %c0_i32_0 : i32, i32, i32
  }
  func.func @transform_15(%arg0: i32, %arg1: i32) -> (i32, i32, i32) {
    %c0_i32 = arith.constant 0 : i32
    %c0_i32_0 = arith.constant 0 : i32
    %c0_i32_1 = arith.constant 0 : i32
    return %arg1, %c0_i32, %c0_i32_0 : i32, i32, i32
  }
  func.func @transform_16(%arg0: i32, %arg1: i32) -> (i32, i32, i32) {
    %c0_i32 = arith.constant 0 : i32
    %c0_i32_0 = arith.constant 0 : i32
    %c0_i32_1 = arith.constant 0 : i32
    return %arg0, %c0_i32, %c0_i32_0 : i32, i32, i32
  }
}

</mosaic_0001>

<llo_original>
// kernel: forward.1
$region0: #{forward.1}
  #allocation0 [shape = 'u32[]', space=smem, size = 0x4, offset = 0x4, fixed_abs, tag = 'smem constant byte address 0x4 - core index']
  #allocation1 [shape = 'u32[144,128]{1,0:T(1,128)}', space=vmem, size = 0x12000, scoped, tag = 'internal scratch']
  %s0 = inlined_call_operand.vmem [shape: f32[2,8,32], index: 0, kind: input, shape index: {}]
  %s1 = inlined_call_operand.vmem [shape: f32[2,1,8], index: 1, kind: input, shape index: {}]
  %s2 = inlined_call_operand.vmem [shape: f32[1,32], index: 2, kind: input, shape index: {}]
  %s3 = inlined_call_operand.vmem [shape: f32[1,32], index: 3, kind: input, shape index: {}]
  %s4 = inlined_call_operand.vmem [shape: f32[2,32,96], index: 4, kind: input, shape index: {}]
  %s5 = inlined_call_operand.vmem [shape: f32[2,1,96], index: 5, kind: input, shape index: {}]
  %s6 = inlined_call_operand.vmem [shape: f32[2,32,32], index: 6, kind: input, shape index: {}]
  %s7 = inlined_call_operand.vmem [shape: f32[2,1,32], index: 7, kind: input, shape index: {}]
  %s8 = inlined_call_operand.vmem [shape: f32[2,1,32], index: 8, kind: input, shape index: {}]
  %s9 = inlined_call_operand.vmem [shape: f32[2,1,32], index: 9, kind: input, shape index: {}]
  %s10 = inlined_call_operand.vmem [shape: f32[2,32,64], index: 10, kind: input, shape index: {}]
  %s11 = inlined_call_operand.vmem [shape: f32[2,1,64], index: 11, kind: input, shape index: {}]
  %s12 = inlined_call_operand.vmem [shape: f32[2,64,32], index: 12, kind: input, shape index: {}]
  %s13 = inlined_call_operand.vmem [shape: f32[2,1,32], index: 13, kind: input, shape index: {}]
  %s14 = inlined_call_operand.vmem [shape: f32[2,1,32], index: 14, kind: input, shape index: {}]
  %s15 = inlined_call_operand.vmem [shape: f32[2,1,32], index: 15, kind: input, shape index: {}]
  %s16 = inlined_call_operand.vmem [shape: f32[2,8,32], index: 16, kind: output, shape index: {}]
  %s17 = sld [smem:[#allocation0]]
  $region101: #{forward.1} parent=0
    _
  %s19 = ssub.s32 1, %s17
  %s20 = scalar_select 0, %s19, %s17
  loop: start=0, step=1, limit=6
  $region2: #{forward.1} parent=0 // loop_pre_header
    _
  $region3: #{forward.1} parent=0 // loop_header
    %s22 = sphi 0, %s26
    %p23 = scmp.ge.s32.totalorder %s22, 6
    %s29 = sphi 0, %s41
    %s30 = sphi 0, %s37
    %s31 = sphi 0, %s29
    %s32 = sphi 0, %s30
    %s33 = sphi 0, %s31
    %s34 = sphi 0, %s32
    %s44 = sphi 0, %s46
    %s47 = sphi 0, %s44
    %s48 = sphi 0, %s47
    %s64 = sphi 0, %s48
    %s70 = sphi 0, %s72
    %s73 = sphi 0, %s70
    %s74 = sphi 0, %s73
    %s90 = sphi 0, %s74
    %s94 = sphi 0, %s94
    %s96 = sphi 0, %s94
    %s97 = sphi 0, %s96
    %s111 = sphi 0, %s97
    %s115 = sphi 0, %s115
    %s117 = sphi 0, %s115
    %s118 = sphi 0, %s117
    %s132 = sphi 0, %s118
    %s138 = sphi 0, %s140
    %s141 = sphi 0, %s138
    %s142 = sphi 0, %s141
    %s158 = sphi 0, %s142
    %s164 = sphi 0, %s166
    %s167 = sphi 0, %s164
    %s168 = sphi 0, %s167
    %s184 = sphi 0, %s168
    %s190 = sphi 0, %s192
    %s193 = sphi 0, %s190
    %s194 = sphi 0, %s193
    %s210 = sphi 0, %s194
    %s216 = sphi 0, %s218
    %s219 = sphi 0, %s216
    %s220 = sphi 0, %s219
    %s236 = sphi 0, %s220
    %s242 = sphi 0, %s244
    %s245 = sphi 0, %s242
    %s246 = sphi 0, %s245
    %s262 = sphi 0, %s246
    %s268 = sphi 0, %s270
    %s271 = sphi 0, %s268
    %s272 = sphi 0, %s271
    %s288 = sphi 0, %s272
    %s294 = sphi 0, %s296
    %s297 = sphi 0, %s294
    %s298 = sphi 0, %s297
    %s314 = sphi 0, %s298
    %s320 = sphi 0, %s322
    %s323 = sphi 0, %s320
    %s324 = sphi 0, %s323
    %s340 = sphi 0, %s324
    %s346 = sphi 0, %s348
    %s349 = sphi 0, %s346
    %s350 = sphi 0, %s349
    %s366 = sphi 0, %s350
    %s372 = sphi 0, %s374
    %s375 = sphi 0, %s372
    %s376 = sphi 0, %s375
    %s392 = sphi 0, %s376
    %s398 = sphi 0, %s400
    %s401 = sphi 0, %s398
    %s402 = sphi 0, %s401
    %s418 = sphi 0, %s402
    %s424 = sphi 0, %s426
    %s427 = sphi 0, %s424
    %s428 = sphi 0, %s427
    %s444 = sphi 0, %s428
    %s450 = sphi 0, %s452
    %s453 = sphi 0, %s450
    %s454 = sphi 0, %s453
    %s470 = sphi 0, %s454
  $region4: #{forward.1} parent=0 // loop_header_branch
    %25 = sbr.rel (%p23) target = $region8
  $region5: #{forward.1} parent=0 // loop_body
    %s27 = ssub.s32 %s22, 1
    %s28 = ssub.s32 %s22, 2
    %s35 = sadd.s32 1, %s30
    %p36 = scmp.ge.s32.totalorder %s35, 2
    %s37 = scalar_select %p36, 0, %s35
    %s38 = sadd.s32 1, %s29
    %s39 = scalar_select %p36, %s38, %s29
    %p40 = scmp.ge.s32.totalorder %s39, 2
    %s41 = scalar_select %p40, 0, %s39
    %s42 = ssub.s32 %s29, %s41
    %p43 = scmp.eq.s32.totalorder %s42, 0
    %s45 = sadd.s32 %s44, 1
    %s46 = scalar_select %p43, %s44, %s45
    %p49 = pneg %p43
    %p50 = scmp.eq.s32.totalorder %s22, 3
    %p51 = por %p49, %p50
    %p52 = scmp.ne.s32.totalorder %s44, %s47
    %p53 = scmp.eq.s32.totalorder %s22, 0
    %p54 = por %p52, %p53
    %p55 = scmp.ne.s32.totalorder %s44, %s47
    %p56 = scmp.eq.s32.totalorder %s27, 3
    %p57 = por %p55, %p56
    %p58 = scmp.ne.s32.totalorder %s47, %s48
    %p59 = scmp.eq.s32.totalorder %s27, 0
    %p60 = por %p58, %p59
    %p61 = scmp.ne.s32.totalorder %s47, %s48
    %p62 = scmp.eq.s32.totalorder %s28, 3
    %p63 = por %p61, %p62
    %p65 = scmp.ne.s32.totalorder %s48, %s64
    %p66 = scmp.eq.s32.totalorder %s28, 0
    %p67 = por %p65, %p66
    %s68 = ssub.s32 %s29, %s41
    %p69 = scmp.eq.s32.totalorder %s68, 0
    %s71 = sadd.s32 %s70, 1
    %s72 = scalar_select %p69, %s70, %s71
    %p75 = pneg %p69
    %p76 = scmp.eq.s32.totalorder %s22, 3
    %p77 = por %p75, %p76
    %p78 = scmp.ne.s32.totalorder %s70, %s73
    %p79 = scmp.eq.s32.totalorder %s22, 0
    %p80 = por %p78, %p79
    %p81 = scmp.ne.s32.totalorder %s70, %s73
    %p82 = scmp.eq.s32.totalorder %s27, 3
    %p83 = por %p81, %p82
    %p84 = scmp.ne.s32.totalorder %s73, %s74
    %p85 = scmp.eq.s32.totalorder %s27, 0
    %p86 = por %p84, %p85
    %p87 = scmp.ne.s32.totalorder %s73, %s74
    %p88 = scmp.eq.s32.totalorder %s28, 3
    %p89 = por %p87, %p88
    %p91 = scmp.ne.s32.totalorder %s74, %s90
    %p92 = scmp.eq.s32.totalorder %s28, 0
    %p93 = por %p91, %p92
    %s95 = sadd.s32 %s94, 1
    %p98 = scmp.eq.s32.totalorder %s22, 3
    %p99 = scmp.ne.s32.totalorder %s94, %s96
    %p100 = scmp.eq.s32.totalorder %s22, 0
    %p101 = por %p99, %p100
    %p102 = scmp.ne.s32.totalorder %s94, %s96
    %p103 = scmp.eq.s32.totalorder %s27, 3
    %p104 = por %p102, %p103
    %p105 = scmp.ne.s32.totalorder %s96, %s97
    %p106 = scmp.eq.s32.totalorder %s27, 0
    %p107 = por %p105, %p106
    %p108 = scmp.ne.s32.totalorder %s96, %s97
    %p109 = scmp.eq.s32.totalorder %s28, 3
    %p110 = por %p108, %p109
    %p112 = scmp.ne.s32.totalorder %s97, %s111
    %p113 = scmp.eq.s32.totalorder %s28, 0
    %p114 = por %p112, %p113
    %s116 = sadd.s32 %s115, 1
    %p119 = scmp.eq.s32.totalorder %s22, 3
    %p120 = scmp.ne.s32.totalorder %s115, %s117
    %p121 = scmp.eq.s32.totalorder %s22, 0
    %p122 = por %p120, %p121
    %p123 = scmp.ne.s32.totalorder %s115, %s117
    %p124 = scmp.eq.s32.totalorder %s27, 3
    %p125 = por %p123, %p124
    %p126 = scmp.ne.s32.totalorder %s117, %s118
    %p127 = scmp.eq.s32.totalorder %s27, 0
    %p128 = por %p126, %p127
    %p129 = scmp.ne.s32.totalorder %s117, %s118
    %p130 = scmp.eq.s32.totalorder %s28, 3
    %p131 = por %p129, %p130
    %p133 = scmp.ne.s32.totalorder %s118, %s132
    %p134 = scmp.eq.s32.totalorder %s28, 0
    %p135 = por %p133, %p134
    %s136 = ssub.s32 %s30, %s37
    %p137 = scmp.eq.s32.totalorder %s136, 0
    %s139 = sadd.s32 %s138, 1
    %s140 = scalar_select %p137, %s138, %s139
    %p143 = pneg %p137
    %p144 = scmp.eq.s32.totalorder %s22, 3
    %p145 = por %p143, %p144
    %p146 = scmp.ne.s32.totalorder %s138, %s141
    %p147 = scmp.eq.s32.totalorder %s22, 0
    %p148 = por %p146, %p147
    %p149 = scmp.ne.s32.totalorder %s138, %s141
    %p150 = scmp.eq.s32.totalorder %s27, 3
    %p151 = por %p149, %p150
    %p152 = scmp.ne.s32.totalorder %s141, %s142
    %p153 = scmp.eq.s32.totalorder %s27, 0
    %p154 = por %p152, %p153
    %p155 = scmp.ne.s32.totalorder %s141, %s142
    %p156 = scmp.eq.s32.totalorder %s28, 3
    %p157 = por %p155, %p156
    %p159 = scmp.ne.s32.totalorder %s142, %s158
    %p160 = scmp.eq.s32.totalorder %s28, 0
    %p161 = por %p159, %p160
    %s162 = ssub.s32 %s30, %s37
    %p163 = scmp.eq.s32.totalorder %s162, 0
    %s165 = sadd.s32 %s164, 1
    %s166 = scalar_select %p163, %s164, %s165
    %p169 = pneg %p163
    %p170 = scmp.eq.s32.totalorder %s22, 3
    %p171 = por %p169, %p170
    %p172 = scmp.ne.s32.totalorder %s164, %s167
    %p173 = scmp.eq.s32.totalorder %s22, 0
    %p174 = por %p172, %p173
    %p175 = scmp.ne.s32.totalorder %s164, %s167
    %p176 = scmp.eq.s32.totalorder %s27, 3
    %p177 = por %p175, %p176
    %p178 = scmp.ne.s32.totalorder %s167, %s168
    %p179 = scmp.eq.s32.totalorder %s27, 0
    %p180 = por %p178, %p179
    %p181 = scmp.ne.s32.totalorder %s167, %s168
    %p182 = scmp.eq.s32.totalorder %s28, 3
    %p183 = por %p181, %p182
    %p185 = scmp.ne.s32.totalorder %s168, %s184
    %p186 = scmp.eq.s32.totalorder %s28, 0
    %p187 = por %p185, %p186
    %s188 = ssub.s32 %s30, %s37
    %p189 = scmp.eq.s32.totalorder %s188, 0
    %s191 = sadd.s32 %s190, 1
    %s192 = scalar_select %p189, %s190, %s191
    %p195 = pneg %p189
    %p196 = scmp.eq.s32.totalorder %s22, 3
    %p197 = por %p195, %p196
    %p198 = scmp.ne.s32.totalorder %s190, %s193
    %p199 = scmp.eq.s32.totalorder %s22, 0
    %p200 = por %p198, %p199
    %p201 = scmp.ne.s32.totalorder %s190, %s193
    %p202 = scmp.eq.s32.totalorder %s27, 3
    %p203 = por %p201, %p202
    %p204 = scmp.ne.s32.totalorder %s193, %s194
    %p205 = scmp.eq.s32.totalorder %s27, 0
    %p206 = por %p204, %p205
    %p207 = scmp.ne.s32.totalorder %s193, %s194
    %p208 = scmp.eq.s32.totalorder %s28, 3
    %p209 = por %p207, %p208
    %p211 = scmp.ne.s32.totalorder %s194, %s210
    %p212 = scmp.eq.s32.totalorder %s28, 0
    %p213 = por %p211, %p212
    %s214 = ssub.s32 %s30, %s37
    %p215 = scmp.eq.s32.totalorder %s214, 0
    %s217 = sadd.s32 %s216, 1
    %s218 = scalar_select %p215, %s216, %s217
    %p221 = pneg %p215
    %p222 = scmp.eq.s32.totalorder %s22, 3
    %p223 = por %p221, %p222
    %p224 = scmp.ne.s32.totalorder %s216, %s219
    %p225 = scmp.eq.s32.totalorder %s22, 0
    %p226 = por %p224, %p225
    %p227 = scmp.ne.s32.totalorder %s216, %s219
    %p228 = scmp.eq.s32.totalorder %s27, 3
    %p229 = por %p227, %p228
    %p230 = scmp.ne.s32.totalorder %s219, %s220
    %p231 = scmp.eq.s32.totalorder %s27, 0
    %p232 = por %p230, %p231
    %p233 = scmp.ne.s32.totalorder %s219, %s220
    %p234 = scmp.eq.s32.totalorder %s28, 3
    %p235 = por %p233, %p234
    %p237 = scmp.ne.s32.totalorder %s220, %s236
    %p238 = scmp.eq.s32.totalorder %s28, 0
    %p239 = por %p237, %p238
    %s240 = ssub.s32 %s30, %s37
    %p241 = scmp.eq.s32.totalorder %s240, 0
    %s243 = sadd.s32 %s242, 1
    %s244 = scalar_select %p241, %s242, %s243
    %p247 = pneg %p241
    %p248 = scmp.eq.s32.totalorder %s22, 3
    %p249 = por %p247, %p248
    %p250 = scmp.ne.s32.totalorder %s242, %s245
    %p251 = scmp.eq.s32.totalorder %s22, 0
    %p252 = por %p250, %p251
    %p253 = scmp.ne.s32.totalorder %s242, %s245
    %p254 = scmp.eq.s32.totalorder %s27, 3
    %p255 = por %p253, %p254
    %p256 = scmp.ne.s32.totalorder %s245, %s246
    %p257 = scmp.eq.s32.totalorder %s27, 0
    %p258 = por %p256, %p257
    %p259 = scmp.ne.s32.totalorder %s245, %s246
    %p260 = scmp.eq.s32.totalorder %s28, 3
    %p261 = por %p259, %p260
    %p263 = scmp.ne.s32.totalorder %s246, %s262
    %p264 = scmp.eq.s32.totalorder %s28, 0
    %p265 = por %p263, %p264
    %s266 = ssub.s32 %s30, %s37
    %p267 = scmp.eq.s32.totalorder %s266, 0
    %s269 = sadd.s32 %s268, 1
    %s270 = scalar_select %p267, %s268, %s269
    %p273 = pneg %p267
    %p274 = scmp.eq.s32.totalorder %s22, 3
    %p275 = por %p273, %p274
    %p276 = scmp.ne.s32.totalorder %s268, %s271
    %p277 = scmp.eq.s32.totalorder %s22, 0
    %p278 = por %p276, %p277
    %p279 = scmp.ne.s32.totalorder %s268, %s271
    %p280 = scmp.eq.s32.totalorder %s27, 3
    %p281 = por %p279, %p280
    %p282 = scmp.ne.s32.totalorder %s271, %s272
    %p283 = scmp.eq.s32.totalorder %s27, 0
    %p284 = por %p282, %p283
    %p285 = scmp.ne.s32.totalorder %s271, %s272
    %p286 = scmp.eq.s32.totalorder %s28, 3
    %p287 = por %p285, %p286
    %p289 = scmp.ne.s32.totalorder %s272, %s288
    %p290 = scmp.eq.s32.totalorder %s28, 0
    %p291 = por %p289, %p290
    %s292 = ssub.s32 %s30, %s37
    %p293 = scmp.eq.s32.totalorder %s292, 0
    %s295 = sadd.s32 %s294, 1
    %s296 = scalar_select %p293, %s294, %s295
    %p299 = pneg %p293
    %p300 = scmp.eq.s32.totalorder %s22, 3
    %p301 = por %p299, %p300
    %p302 = scmp.ne.s32.totalorder %s294, %s297
    %p303 = scmp.eq.s32.totalorder %s22, 0
    %p304 = por %p302, %p303
    %p305 = scmp.ne.s32.totalorder %s294, %s297
    %p306 = scmp.eq.s32.totalorder %s27, 3
    %p307 = por %p305, %p306
    %p308 = scmp.ne.s32.totalorder %s297, %s298
    %p309 = scmp.eq.s32.totalorder %s27, 0
    %p310 = por %p308, %p309
    %p311 = scmp.ne.s32.totalorder %s297, %s298
    %p312 = scmp.eq.s32.totalorder %s28, 3
    %p313 = por %p311, %p312
    %p315 = scmp.ne.s32.totalorder %s298, %s314
    %p316 = scmp.eq.s32.totalorder %s28, 0
    %p317 = por %p315, %p316
    %s318 = ssub.s32 %s30, %s37
    %p319 = scmp.eq.s32.totalorder %s318, 0
    %s321 = sadd.s32 %s320, 1
    %s322 = scalar_select %p319, %s320, %s321
    %p325 = pneg %p319
    %p326 = scmp.eq.s32.totalorder %s22, 3
    %p327 = por %p325, %p326
    %p328 = scmp.ne.s32.totalorder %s320, %s323
    %p329 = scmp.eq.s32.totalorder %s22, 0
    %p330 = por %p328, %p329
    %p331 = scmp.ne.s32.totalorder %s320, %s323
    %p332 = scmp.eq.s32.totalorder %s27, 3
    %p333 = por %p331, %p332
    %p334 = scmp.ne.s32.totalorder %s323, %s324
    %p335 = scmp.eq.s32.totalorder %s27, 0
    %p336 = por %p334, %p335
    %p337 = scmp.ne.s32.totalorder %s323, %s324
    %p338 = scmp.eq.s32.totalorder %s28, 3
    %p339 = por %p337, %p338
    %p341 = scmp.ne.s32.totalorder %s324, %s340
    %p342 = scmp.eq.s32.totalorder %s28, 0
    %p343 = por %p341, %p342
    %s344 = ssub.s32 %s30, %s37
    %p345 = scmp.eq.s32.totalorder %s344, 0
    %s347 = sadd.s32 %s346, 1
    %s348 = scalar_select %p345, %s346, %s347
    %p351 = pneg %p345
    %p352 = scmp.eq.s32.totalorder %s22, 3
    %p353 = por %p351, %p352
    %p354 = scmp.ne.s32.totalorder %s346, %s349
    %p355 = scmp.eq.s32.totalorder %s22, 0
    %p356 = por %p354, %p355
    %p357 = scmp.ne.s32.totalorder %s346, %s349
    %p358 = scmp.eq.s32.totalorder %s27, 3
    %p359 = por %p357, %p358
    %p360 = scmp.ne.s32.totalorder %s349, %s350
    %p361 = scmp.eq.s32.totalorder %s27, 0
    %p362 = por %p360, %p361
    %p363 = scmp.ne.s32.totalorder %s349, %s350
    %p364 = scmp.eq.s32.totalorder %s28, 3
    %p365 = por %p363, %p364
    %p367 = scmp.ne.s32.totalorder %s350, %s366
    %p368 = scmp.eq.s32.totalorder %s28, 0
    %p369 = por %p367, %p368
    %s370 = ssub.s32 %s30, %s37
    %p371 = scmp.eq.s32.totalorder %s370, 0
    %s373 = sadd.s32 %s372, 1
    %s374 = scalar_select %p371, %s372, %s373
    %p377 = pneg %p371
    %p378 = scmp.eq.s32.totalorder %s22, 3
    %p379 = por %p377, %p378
    %p380 = scmp.ne.s32.totalorder %s372, %s375
    %p381 = scmp.eq.s32.totalorder %s22, 0
    %p382 = por %p380, %p381
    %p383 = scmp.ne.s32.totalorder %s372, %s375
    %p384 = scmp.eq.s32.totalorder %s27, 3
    %p385 = por %p383, %p384
    %p386 = scmp.ne.s32.totalorder %s375, %s376
    %p387 = scmp.eq.s32.totalorder %s27, 0
    %p388 = por %p386, %p387
    %p389 = scmp.ne.s32.totalorder %s375, %s376
    %p390 = scmp.eq.s32.totalorder %s28, 3
    %p391 = por %p389, %p390
    %p393 = scmp.ne.s32.totalorder %s376, %s392
    %p394 = scmp.eq.s32.totalorder %s28, 0
    %p395 = por %p393, %p394
    %s396 = ssub.s32 %s30, %s37
    %p397 = scmp.eq.s32.totalorder %s396, 0
    %s399 = sadd.s32 %s398, 1
    %s400 = scalar_select %p397, %s398, %s399
    %p403 = pneg %p397
    %p404 = scmp.eq.s32.totalorder %s22, 3
    %p405 = por %p403, %p404
    %p406 = scmp.ne.s32.totalorder %s398, %s401
    %p407 = scmp.eq.s32.totalorder %s22, 0
    %p408 = por %p406, %p407
    %p409 = scmp.ne.s32.totalorder %s398, %s401
    %p410 = scmp.eq.s32.totalorder %s27, 3
    %p411 = por %p409, %p410
    %p412 = scmp.ne.s32.totalorder %s401, %s402
    %p413 = scmp.eq.s32.totalorder %s27, 0
    %p414 = por %p412, %p413
    %p415 = scmp.ne.s32.totalorder %s401, %s402
    %p416 = scmp.eq.s32.totalorder %s28, 3
    %p417 = por %p415, %p416
    %p419 = scmp.ne.s32.totalorder %s402, %s418
    %p420 = scmp.eq.s32.totalorder %s28, 0
    %p421 = por %p419, %p420
    %s422 = ssub.s32 %s30, %s37
    %p423 = scmp.eq.s32.totalorder %s422, 0
    %s425 = sadd.s32 %s424, 1
    %s426 = scalar_select %p423, %s424, %s425
    %p429 = pneg %p423
    %p430 = scmp.eq.s32.totalorder %s22, 3
    %p431 = por %p429, %p430
    %p432 = scmp.ne.s32.totalorder %s424, %s427
    %p433 = scmp.eq.s32.totalorder %s22, 0
    %p434 = por %p432, %p433
    %p435 = scmp.ne.s32.totalorder %s424, %s427
    %p436 = scmp.eq.s32.totalorder %s27, 3
    %p437 = por %p435, %p436
    %p438 = scmp.ne.s32.totalorder %s427, %s428
    %p439 = scmp.eq.s32.totalorder %s27, 0
    %p440 = por %p438, %p439
    %p441 = scmp.ne.s32.totalorder %s427, %s428
    %p442 = scmp.eq.s32.totalorder %s28, 3
    %p443 = por %p441, %p442
    %p445 = scmp.ne.s32.totalorder %s428, %s444
    %p446 = scmp.eq.s32.totalorder %s28, 0
    %p447 = por %p445, %p446
    %s448 = ssub.s32 %s29, %s41
    %p449 = scmp.eq.s32.totalorder %s448, 0
    %s451 = sadd.s32 %s450, 1
    %s452 = scalar_select %p449, %s450, %s451
    %p455 = pneg %p449
    %p456 = scmp.eq.s32.totalorder %s22, 3
    %p457 = por %p455, %p456
    %p458 = scmp.ne.s32.totalorder %s450, %s453
    %p459 = scmp.eq.s32.totalorder %s22, 0
    %p460 = por %p458, %p459
    %p461 = scmp.ne.s32.totalorder %s450, %s453
    %p462 = scmp.eq.s32.totalorder %s27, 3
    %p463 = por %p461, %p462
    %p464 = scmp.ne.s32.totalorder %s453, %s454
    %p465 = scmp.eq.s32.totalorder %s27, 0
    %p466 = por %p464, %p465
    %p467 = scmp.ne.s32.totalorder %s453, %s454
    %p468 = scmp.eq.s32.totalorder %s28, 3
    %p469 = por %p467, %p468
    %p471 = scmp.ne.s32.totalorder %s454, %s470
    %p472 = scmp.eq.s32.totalorder %s28, 0
    %p473 = por %p471, %p472
    %p474 = scmp.le.s32.totalorder 1, %s22
    %p475 = scmp.lt.s32.totalorder %s22, 5
    %p476 = pnand %p474, %p475
    %p477 = pneg %p476
    // Predicated region
    $region9: #{forward.1} parent=5 // pred_check
      _
    $region10: #{forward.1} parent=5 // pred_check_branch
      %479 = sbr.rel (%p476) target = $region12
    $region11: #{forward.1} parent=5 // pred_region
      %s480 = ssub.s32 %s22, 1
      // Predicated region
      $region13: #{forward.1} parent=11 // pred_check
        %p481 = pneg %p107
      $region14: #{forward.1} parent=11 // pred_check_branch
        %483 = sbr.rel (%p481) target = $region16
      $region15: #{forward.1} parent=11 // pred_region
        _
      $region16: #{forward.1} parent=11 // pred_fallthru
        _
      // Predicated region
      $region17: #{forward.1} parent=11 // pred_check
        %p484 = pneg %p128
      $region18: #{forward.1} parent=11 // pred_check_branch
        %486 = sbr.rel (%p484) target = $region20
      $region19: #{forward.1} parent=11 // pred_region
        _
      $region20: #{forward.1} parent=11 // pred_fallthru
        _
    $region12: #{forward.1} parent=5 // pred_fallthru
      _
    %p487 = scmp.lt.s32.totalorder %s22, 4
    // Predicated region
    $region21: #{forward.1} parent=5 // pred_check
      %p488 = pneg %p487
    $region22: #{forward.1} parent=5 // pred_check_branch
      %490 = sbr.rel (%p488) target = $region24
    $region23: #{forward.1} parent=5 // pred_region
      // Predicated region
      $region25: #{forward.1} parent=23 // pred_check
        %p491 = pneg %p54
      $region26: #{forward.1} parent=23 // pred_check_branch
        %493 = sbr.rel (%p491) target = $region28
      $region27: #{forward.1} parent=23 // pred_region
        %p494 = scmp.lt.s32.totalorder %s29, 1
        %s495 = scalar_select %p494, %s29, 1
        %s496 = smul.addr %s495, 8
        %s497 = scalar_lea.vmem %s0, %s496
      $region28: #{forward.1} parent=23 // pred_fallthru
        _
      // Predicated region
      $region29: #{forward.1} parent=23 // pred_check
        %p498 = pneg %p80
      $region30: #{forward.1} parent=23 // pred_check_branch
        %500 = sbr.rel (%p498) target = $region32
      $region31: #{forward.1} parent=23 // pred_region
        %p501 = scmp.lt.s32.totalorder %s29, 1
        %s502 = scalar_select %p501, %s29, 1
        %s503 = scalar_lea.vmem %s1, %s502
      $region32: #{forward.1} parent=23 // pred_fallthru
        _
      // Predicated region
      $region33: #{forward.1} parent=23 // pred_check
        %p504 = pneg %p148
      $region34: #{forward.1} parent=23 // pred_check_branch
        %506 = sbr.rel (%p504) target = $region36
      $region35: #{forward.1} parent=23 // pred_region
        %p507 = scmp.lt.s32.totalorder %s30, 1
        %s508 = scalar_select %p507, %s30, 1
        %s509 = smul.addr %s508, 4
        %s510 = smul.addr %s509, 8
        %s511 = scalar_lea.vmem %s4, %s510
      $region36: #{forward.1} parent=23 // pred_fallthru
        _
      // Predicated region
      $region37: #{forward.1} parent=23 // pred_check
        %p512 = pneg %p174
      $region38: #{forward.1} parent=23 // pred_check_branch
        %514 = sbr.rel (%p512) target = $region40
      $region39: #{forward.1} parent=23 // pred_region
        %p515 = scmp.lt.s32.totalorder %s30, 1
        %s516 = scalar_select %p515, %s30, 1
        %s517 = scalar_lea.vmem %s5, %s516
      $region40: #{forward.1} parent=23 // pred_fallthru
        _
      // Predicated region
      $region41: #{forward.1} parent=23 // pred_check
        %p518 = pneg %p200
      $region42: #{forward.1} parent=23 // pred_check_branch
        %520 = sbr.rel (%p518) target = $region44
      $region43: #{forward.1} parent=23 // pred_region
        %p521 = scmp.lt.s32.totalorder %s30, 1
        %s522 = scalar_select %p521, %s30, 1
        %s523 = smul.addr %s522, 4
        %s524 = smul.addr %s523, 8
        %s525 = scalar_lea.vmem %s6, %s524
      $region44: #{forward.1} parent=23 // pred_fallthru
        _
      // Predicated region
      $region45: #{forward.1} parent=23 // pred_check
        %p526 = pneg %p226
      $region46: #{forward.1} parent=23 // pred_check_branch
        %528 = sbr.rel (%p526) target = $region48
      $region47: #{forward.1} parent=23 // pred_region
        %p529 = scmp.lt.s32.totalorder %s30, 1
        %s530 = scalar_select %p529, %s30, 1
        %s531 = scalar_lea.vmem %s7, %s530
      $region48: #{forward.1} parent=23 // pred_fallthru
        _
      // Predicated region
      $region49: #{forward.1} parent=23 // pred_check
        %p532 = pneg %p252
      $region50: #{forward.1} parent=23 // pred_check_branch
        %534 = sbr.rel (%p532) target = $region52
      $region51: #{forward.1} parent=23 // pred_region
        %p535 = scmp.lt.s32.totalorder %s30, 1
        %s536 = scalar_select %p535, %s30, 1
        %s537 = scalar_lea.vmem %s8, %s536
      $region52: #{forward.1} parent=23 // pred_fallthru
        _
      // Predicated region
      $region53: #{forward.1} parent=23 // pred_check
        %p538 = pneg %p278
      $region54: #{forward.1} parent=23 // pred_check_branch
        %540 = sbr.rel (%p538) target = $region56
      $region55: #{forward.1} parent=23 // pred_region
        %p541 = scmp.lt.s32.totalorder %s30, 1
        %s542 = scalar_select %p541, %s30, 1
        %s543 = scalar_lea.vmem %s9, %s542
      $region56: #{forward.1} parent=23 // pred_fallthru
        _
      // Predicated region
      $region57: #{forward.1} parent=23 // pred_check
        %p544 = pneg %p304
      $region58: #{forward.1} parent=23 // pred_check_branch
        %546 = sbr.rel (%p544) target = $region60
      $region59: #{forward.1} parent=23 // pred_region
        %p547 = scmp.lt.s32.totalorder %s30, 1
        %s548 = scalar_select %p547, %s30, 1
        %s549 = smul.addr %s548, 4
        %s550 = smul.addr %s549, 8
        %s551 = scalar_lea.vmem %s10, %s550
      $region60: #{forward.1} parent=23 // pred_fallthru
        _
      // Predicated region
      $region61: #{forward.1} parent=23 // pred_check
        %p552 = pneg %p330
      $region62: #{forward.1} parent=23 // pred_check_branch
        %554 = sbr.rel (%p552) target = $region64
      $region63: #{forward.1} parent=23 // pred_region
        %p555 = scmp.lt.s32.totalorder %s30, 1
        %s556 = scalar_select %p555, %s30, 1
        %s557 = scalar_lea.vmem %s11, %s556
      $region64: #{forward.1} parent=23 // pred_fallthru
        _
      // Predicated region
      $region65: #{forward.1} parent=23 // pred_check
        %p558 = pneg %p356
      $region66: #{forward.1} parent=23 // pred_check_branch
        %560 = sbr.rel (%p558) target = $region68
      $region67: #{forward.1} parent=23 // pred_region
        %p561 = scmp.lt.s32.totalorder %s30, 1
        %s562 = scalar_select %p561, %s30, 1
        %s563 = smul.addr %s562, 8
        %s564 = smul.addr %s563, 8
        %s565 = scalar_lea.vmem %s12, %s564
      $region68: #{forward.1} parent=23 // pred_fallthru
        _
      // Predicated region
      $region69: #{forward.1} parent=23 // pred_check
        %p566 = pneg %p382
      $region70: #{forward.1} parent=23 // pred_check_branch
        %568 = sbr.rel (%p566) target = $region72
      $region71: #{forward.1} parent=23 // pred_region
        %p569 = scmp.lt.s32.totalorder %s30, 1
        %s570 = scalar_select %p569, %s30, 1
        %s571 = scalar_lea.vmem %s13, %s570
      $region72: #{forward.1} parent=23 // pred_fallthru
        _
      // Predicated region
      $region73: #{forward.1} parent=23 // pred_check
        %p572 = pneg %p408
      $region74: #{forward.1} parent=23 // pred_check_branch
        %574 = sbr.rel (%p572) target = $region76
      $region75: #{forward.1} parent=23 // pred_region
        %p575 = scmp.lt.s32.totalorder %s30, 1
        %s576 = scalar_select %p575, %s30, 1
        %s577 = scalar_lea.vmem %s14, %s576
      $region76: #{forward.1} parent=23 // pred_fallthru
        _
      // Predicated region
      $region77: #{forward.1} parent=23 // pred_check
        %p578 = pneg %p434
      $region78: #{forward.1} parent=23 // pred_check_branch
        %580 = sbr.rel (%p578) target = $region80
      $region79: #{forward.1} parent=23 // pred_region
        %p581 = scmp.lt.s32.totalorder %s30, 1
        %s582 = scalar_select %p581, %s30, 1
        %s583 = scalar_lea.vmem %s15, %s582
      $region80: #{forward.1} parent=23 // pred_fallthru
        _
    $region24: #{forward.1} parent=5 // pred_fallthru
      _
    %p584 = scmp.le.s32.totalorder 1, %s22
    %p585 = scmp.lt.s32.totalorder %s22, 5
    %p586 = pnand %p584, %p585
    %p587 = pneg %p586
    // Predicated region
    $region81: #{forward.1} parent=5 // pred_check
      _
    $region82: #{forward.1} parent=5 // pred_check_branch
      %589 = sbr.rel (%p586) target = $region84
    $region83: #{forward.1} parent=5 // pred_region
      %s590 = ssub.s32 %s22, 1
      %p591 = scmp.lt.s32.totalorder %s31, 1
      %s592 = scalar_select %p591, %s31, 1
      %s593 = smul.addr %s592, 8
      %s594 = scalar_lea.vmem %s0, %s593
      %p595 = pneg %p60
      %p596 = pneg %p57
      %p597 = scmp.lt.s32.totalorder %s31, 1
      %s598 = scalar_select %p597, %s31, 1
      %s599 = scalar_lea.vmem %s1, %s598
      %p600 = pneg %p86
      %p601 = pneg %p83
      %p602 = pneg %p107
      %p603 = pneg %p104
      %p604 = pneg %p128
      %p605 = pneg %p125
      %p606 = scmp.lt.s32.totalorder %s32, 1
      %s607 = scalar_select %p606, %s32, 1
      %s608 = smul.addr %s607, 4
      %s609 = smul.addr %s608, 8
      %s610 = scalar_lea.vmem %s4, %s609
      %p611 = pneg %p154
      %p612 = pneg %p151
      %p613 = scmp.lt.s32.totalorder %s32, 1
      %s614 = scalar_select %p613, %s32, 1
      %s615 = scalar_lea.vmem %s5, %s614
      %p616 = pneg %p180
      %p617 = pneg %p177
      %p618 = scmp.lt.s32.totalorder %s32, 1
      %s619 = scalar_select %p618, %s32, 1
      %s620 = smul.addr %s619, 4
      %s621 = smul.addr %s620, 8
      %s622 = scalar_lea.vmem %s6, %s621
      %p623 = pneg %p206
      %p624 = pneg %p203
      %p625 = scmp.lt.s32.totalorder %s32, 1
      %s626 = scalar_select %p625, %s32, 1
      %s627 = scalar_lea.vmem %s7, %s626
      %p628 = pneg %p232
      %p629 = pneg %p229
      %p630 = scmp.lt.s32.totalorder %s32, 1
      %s631 = scalar_select %p630, %s32, 1
      %s632 = scalar_lea.vmem %s8, %s631
      %p633 = pneg %p258
      %p634 = pneg %p255
      %p635 = scmp.lt.s32.totalorder %s32, 1
      %s636 = scalar_select %p635, %s32, 1
      %s637 = scalar_lea.vmem %s9, %s636
      %p638 = pneg %p284
      %p639 = pneg %p281
      %p640 = scmp.lt.s32.totalorder %s32, 1
      %s641 = scalar_select %p640, %s32, 1
      %s642 = smul.addr %s641, 4
      %s643 = smul.addr %s642, 8
      %s644 = scalar_lea.vmem %s10, %s643
      %p645 = pneg %p310
      %p646 = pneg %p307
      %p647 = scmp.lt.s32.totalorder %s32, 1
      %s648 = scalar_select %p647, %s32, 1
      %s649 = scalar_lea.vmem %s11, %s648
      %p650 = pneg %p336
      %p651 = pneg %p333
      %p652 = scmp.lt.s32.totalorder %s32, 1
      %s653 = scalar_select %p652, %s32, 1
      %s654 = smul.addr %s653, 8
      %s655 = smul.addr %s654, 8
      %s656 = scalar_lea.vmem %s12, %s655
      %p657 = pneg %p362
      %p658 = pneg %p359
      %p659 = scmp.lt.s32.totalorder %s32, 1
      %s660 = scalar_select %p659, %s32, 1
      %s661 = scalar_lea.vmem %s13, %s660
      %p662 = pneg %p388
      %p663 = pneg %p385
      %p664 = scmp.lt.s32.totalorder %s32, 1
      %s665 = scalar_select %p664, %s32, 1
      %s666 = scalar_lea.vmem %s14, %s665
      %p667 = pneg %p414
      %p668 = pneg %p411
      %p669 = scmp.lt.s32.totalorder %s32, 1
      %s670 = scalar_select %p669, %s32, 1
      %s671 = scalar_lea.vmem %s15, %s670
      %p672 = pneg %p440
      %p673 = pneg %p437
      %p674 = pneg %p466
      %p675 = pneg %p463
      %p676 = scmp.lt.s32.totalorder %s31, 1
      %s677 = scalar_select %p676, %s31, 1
      %s678 = smul.addr %s677, 8
      %s679 = scalar_lea.vmem %s16, %s678
      %p680 = scmp.lt.s32.totalorder %s31, 1
      %s681 = scalar_select %p680, %s31, 1
      %s682 = smul.addr %s681, 8
      %s683 = scalar_lea.vmem %s0, %s682
      %p684 = scmp.lt.s32.totalorder %s31, 1
      %s685 = scalar_select %p684, %s31, 1
      %s686 = scalar_lea.vmem %s1, %s685
      %p687 = scmp.lt.s32.totalorder %s32, 1
      %s688 = scalar_select %p687, %s32, 1
      %s689 = smul.addr %s688, 4
      %s690 = smul.addr %s689, 8
      %s691 = scalar_lea.vmem %s4, %s690
      %p692 = scmp.lt.s32.totalorder %s32, 1
      %s693 = scalar_select %p692, %s32, 1
      %s694 = scalar_lea.vmem %s5, %s693
      %p695 = scmp.lt.s32.totalorder %s32, 1
      %s696 = scalar_select %p695, %s32, 1
      %s697 = smul.addr %s696, 4
      %s698 = smul.addr %s697, 8
      %s699 = scalar_lea.vmem %s6, %s698
      %p700 = scmp.lt.s32.totalorder %s32, 1
      %s701 = scalar_select %p700, %s32, 1
      %s702 = scalar_lea.vmem %s7, %s701
      %p703 = scmp.lt.s32.totalorder %s32, 1
      %s704 = scalar_select %p703, %s32, 1
      %s705 = scalar_lea.vmem %s8, %s704
      %p706 = scmp.lt.s32.totalorder %s32, 1
      %s707 = scalar_select %p706, %s32, 1
      %s708 = scalar_lea.vmem %s9, %s707
      %p709 = scmp.lt.s32.totalorder %s32, 1
      %s710 = scalar_select %p709, %s32, 1
      %s711 = smul.addr %s710, 4
      %s712 = smul.addr %s711, 8
      %s713 = scalar_lea.vmem %s10, %s712
      %p714 = scmp.lt.s32.totalorder %s32, 1
      %s715 = scalar_select %p714, %s32, 1
      %s716 = scalar_lea.vmem %s11, %s715
      %p717 = scmp.lt.s32.totalorder %s32, 1
      %s718 = scalar_select %p717, %s32, 1
      %s719 = smul.addr %s718, 8
      %s720 = smul.addr %s719, 8
      %s721 = scalar_lea.vmem %s12, %s720
      %p722 = scmp.lt.s32.totalorder %s32, 1
      %s723 = scalar_select %p722, %s32, 1
      %s724 = scalar_lea.vmem %s13, %s723
      %p725 = scmp.lt.s32.totalorder %s32, 1
      %s726 = scalar_select %p725, %s32, 1
      %s727 = scalar_lea.vmem %s14, %s726
      %p728 = scmp.lt.s32.totalorder %s32, 1
      %s729 = scalar_select %p728, %s32, 1
      %s730 = scalar_lea.vmem %s15, %s729
      %p731 = scmp.lt.s32.totalorder %s31, 1
      %s732 = scalar_select %p731, %s31, 1
      %s733 = smul.addr %s732, 8
      %s734 = scalar_lea.vmem %s16, %s733
      %p735 = scmp.eq.s32.totalorder %s32, 0
      // Predicated region
      $region85: #{forward.1} parent=83 // pred_check
        %p736 = pneg %p735
      $region86: #{forward.1} parent=83 // pred_check_branch
        %738 = sbr.rel (%p736) target = $region88
      $region87: #{forward.1} parent=83 // pred_region
        %v739 = vld [vmem:[%s683] sm:$0xff]
        %v740 = vld [vmem:[%s2] sm:$0x1]
        %v741 = vld [vmem:[%s3] sm:$0x1]
        %vm742 = vcmask 261120
        %v743 = vsel %vm742, %v739, 0.0
        %744 = vadd.xlane.f32.xlu0 %v743
        %v745 = vpop.xlane.xlu0 %744
        %v746 = vrcp.pop 32.0
        %v747 = vmul.f32 %v745, %v746
        %v748 = vsub.f32 %v739, %v747
        %v749 = vmul.f32 %v748, %v748
        %v750 = vsel %vm742, %v749, 0.0
        %751 = vadd.xlane.f32.xlu0 %v750
        %v752 = vpop.xlane.xlu0 %751
        %v753 = vmul.f32 %v752, %v746
        %v754 = vadd.f32 %v753, 1e-12
        %v755 = vrsqrt.pop %v754
        %v756 = vmul.f32 %v748, %v755
        %v758 = vlaneseq
        %v759 = vshrl.u32 %v758, 7
        %v760 = vsub.s32 0, %v759
        %v761 = vrot.slane %v740, %v760
        %v763 = vmul.f32 %v756, %v761
        %v765 = vlaneseq
        %v766 = vshrl.u32 %v765, 7
        %v767 = vsub.s32 0, %v766
        %v768 = vrot.slane %v741, %v767
        %v770 = vadd.f32 %v763, %v768
        %771 = vst.msk [vmem:[%s734] sm:$0xff] %vm742, %v770
      $region88: #{forward.1} parent=83 // pred_fallthru
        _
      %v772 = vld [vmem:[%s734] sm:$0xff]
      %v773 = vld [vmem:[%s686] sm:$0x1]
      %v774 = vld [vmem:[%s691] sm:$0xff]
      %v775 = vld [vmem:[%s691 + $0x8] sm:$0xff]
      %v776 = vld [vmem:[%s691 + $0x10] sm:$0xff]
      %v777 = vld [vmem:[%s691 + $0x18] sm:$0xff]
      %v778 = vld [vmem:[%s694] sm:$0x1]
      %v780 = vlaneseq
      %v781 = vshrl.u32 %v780, 7
      %v782 = vsub.s32 0, %v781
      %v783 = vrot.slane %v778, %v782
      %vm785 = vcmask 261120
      %v787 = vsel %vm785, %v772, 0
      %789 = vmatprep.subr.mxu0 0.0
      %790 = vmatpush1.msra.mxu0 0.0
      %791 = vmatprep.subr.mxu0 0.0
      %792 = vmatpush1.msra.mxu0 0.0
      %793 = vmatprep.subr.mxu0 0.0
      %794 = vmatpush1.msra.mxu0 0.0
      %795 = vmatprep.subr.mxu0 0.0
      %796 = vmatpush1.msra.mxu0 0.0
      %797 = vmatprep.subr.mxu0 0.0
      %798 = vmatpush1.msra.mxu0 0.0
      %799 = vmatprep.subr.mxu0 0.0
      %800 = vmatpush1.msra.mxu0 0.0
      %801 = vmatprep.subr.mxu0 0.0
      %802 = vmatpush1.msra.mxu0 0.0
      %803 = vmatprep.subr.mxu0 0.0
      %804 = vmatpush1.msra.mxu0 0.0
      %805 = vmatprep.subr.mxu0 0.0
      %806 = vmatpush1.msra.mxu0 0.0
      %807 = vmatprep.subr.mxu0 0.0
      %808 = vmatpush1.msra.mxu0 0.0
      %809 = vmatprep.subr.mxu0 0.0
      %810 = vmatpush1.msra.mxu0 0.0
      %811 = vmatprep.subr.mxu0 0.0
      %812 = vmatpush1.msra.mxu0 0.0
      %813 = vmatprep.subr.mxu0 0.0
      %814 = vmatpush1.msra.mxu0 %v777
      %815 = vmatprep.subr.mxu0 0.0
      %816 = vmatpush1.msra.mxu0 %v776
      %817 = vmatprep.subr.mxu0 0.0
      %818 = vmatpush1.msra.mxu0 %v775
      %819 = vmatprep.subr.mxu0 0.0
      %820 = vmatpush1.msra.mxu0 %v774
      %821 = vmatprep.subr.mxu0 0.0
      %822 = vmatpush2.msra.mxu0 0.0
      %823 = vmatprep.subr.mxu0 0.0
      %824 = vmatpush2.msra.mxu0 0.0
      %825 = vmatprep.subr.mxu0 0.0
      %826 = vmatpush2.msra.mxu0 0.0
      %827 = vmatprep.subr.mxu0 0.0
      %828 = vmatpush2.msra.mxu0 0.0
      %829 = vmatprep.subr.mxu0 0.0
      %830 = vmatpush2.msra.mxu0 0.0
      %831 = vmatprep.subr.mxu0 0.0
      %832 = vmatpush2.msra.mxu0 0.0
      %833 = vmatprep.subr.mxu0 0.0
      %834 = vmatpush2.msra.mxu0 0.0
      %835 = vmatprep.subr.mxu0 0.0
      %836 = vmatpush2.msra.mxu0 0.0
      %837 = vmatprep.subr.mxu0 0.0
      %838 = vmatpush2.msra.mxu0 0.0
      %839 = vmatprep.subr.mxu0 0.0
      %840 = vmatpush2.msra.mxu0 0.0
      %841 = vmatprep.subr.mxu0 0.0
      %842 = vmatpush2.msra.mxu0 0.0
      %843 = vmatprep.subr.mxu0 0.0
      %844 = vmatpush2.msra.mxu0 0.0
      %845 = vmatprep.subr.mxu0 0.0
      %846 = vmatpush2.msra.mxu0 0.0
      %847 = vmatprep.subr.mxu0 0.0
      %848 = vmatpush2.msra.mxu0 0.0
      %849 = vmatprep.subr.mxu0 0.0
      %850 = vmatpush2.msra.mxu0 0.0
      %851 = vmatprep.subr.mxu0 0.0
      %852 = vmatpush2.msra.mxu0 0.0
      %853 = vmatprep.mubr.f32.mxu0 0.0
      %854 = vmatmul.mubr.f32.gmra.mxu0 %v787
      %v855 = vpop.f32.mrf.mxu0
      %v856 = vadd.f32 %v783, %v855
      %v857 = vpop.f32.mrf.mxu0
      %858 = vdwg.mxu0
      %v859 = vld [vmem:[%s699] sm:$0xff]
      %v860 = vld [vmem:[%s699 + $0x8] sm:$0xff]
      %v861 = vld [vmem:[%s699 + $0x10] sm:$0xff]
      %v862 = vld [vmem:[%s699 + $0x18] sm:$0xff]
      %v863 = vmul.f32 %v856, 0.25
      %v865 = vlaneseq
      %v866 = vshrl.u32 %v865, 7
      %v867 = vsub.s32 0, %v866
      %v868 = vrot.slane %v773, %v867
      %871 = vrot.lane.b32.xlu0 %v856, 96
      %v872 = vpop.permute.xlu0 %871
      %vm873 = vcmask 130048
      %v875 = vsel %vm873, %v863, 0
      %v877 = vsel %vm873, %v872, 0
      %879 = vmatprep.subr.mxu0 0.0
      %880 = vmatpush1.xpose.msra.mxu0 0.0
      %881 = vmatprep.subr.mxu0 0.0
      %882 = vmatpush1.xpose.msra.mxu0 0.0
      %883 = vmatprep.subr.mxu0 0.0
      %884 = vmatpush1.xpose.msra.mxu0 0.0
      %885 = vmatprep.subr.mxu0 0.0
      %886 = vmatpush1.xpose.msra.mxu0 0.0
      %887 = vmatprep.subr.mxu0 0.0
      %888 = vmatpush1.xpose.msra.mxu0 0.0
      %889 = vmatprep.subr.mxu0 0.0
      %890 = vmatpush1.xpose.msra.mxu0 0.0
      %891 = vmatprep.subr.mxu0 0.0
      %892 = vmatpush1.xpose.msra.mxu0 0.0
      %893 = vmatprep.subr.mxu0 0.0
      %894 = vmatpush1.xpose.msra.mxu0 0.0
      %895 = vmatprep.subr.mxu0 0.0
      %896 = vmatpush1.xpose.msra.mxu0 0.0
      %897 = vmatprep.subr.mxu0 0.0
      %898 = vmatpush1.xpose.msra.mxu0 0.0
      %899 = vmatprep.subr.mxu0 0.0
      %900 = vmatpush1.xpose.msra.mxu0 0.0
      %901 = vmatprep.subr.mxu0 0.0
      %902 = vmatpush1.xpose.msra.mxu0 0.0
      %903 = vmatprep.subr.mxu0 0.0
      %904 = vmatpush1.xpose.msra.mxu0 0.0
      %905 = vmatprep.subr.mxu0 0.0
      %906 = vmatpush1.xpose.msra.mxu0 0.0
      %907 = vmatprep.subr.mxu0 0.0
      %908 = vmatpush1.xpose.msra.mxu0 0.0
      %909 = vmatprep.subr.mxu0 0.0
      %910 = vmatpush1.xpose.msra.mxu0 %v877
      %911 = vmatprep.subr.mxu0 0.0
      %912 = vmatpush2.xpose.msra.mxu0 0.0
      %913 = vmatprep.subr.mxu0 0.0
      %914 = vmatpush2.xpose.msra.mxu0 0.0
      %915 = vmatprep.subr.mxu0 0.0
      %916 = vmatpush2.xpose.msra.mxu0 0.0
      %917 = vmatprep.subr.mxu0 0.0
      %918 = vmatpush2.xpose.msra.mxu0 0.0
      %919 = vmatprep.subr.mxu0 0.0
      %920 = vmatpush2.xpose.msra.mxu0 0.0
      %921 = vmatprep.subr.mxu0 0.0
      %922 = vmatpush2.xpose.msra.mxu0 0.0
      %923 = vmatprep.subr.mxu0 0.0
      %924 = vmatpush2.xpose.msra.mxu0 0.0
      %925 = vmatprep.subr.mxu0 0.0
      %926 = vmatpush2.xpose.msra.mxu0 0.0
      %927 = vmatprep.subr.mxu0 0.0
      %928 = vmatpush2.xpose.msra.mxu0 0.0
      %929 = vmatprep.subr.mxu0 0.0
      %930 = vmatpush2.xpose.msra.mxu0 0.0
      %931 = vmatprep.subr.mxu0 0.0
      %932 = vmatpush2.xpose.msra.mxu0 0.0
      %933 = vmatprep.subr.mxu0 0.0
      %934 = vmatpush2.xpose.msra.mxu0 0.0
      %935 = vmatprep.subr.mxu0 0.0
      %936 = vmatpush2.xpose.msra.mxu0 0.0
      %937 = vmatprep.subr.mxu0 0.0
      %938 = vmatpush2.xpose.msra.mxu0 0.0
      %939 = vmatprep.subr.mxu0 0.0
      %940 = vmatpush2.xpose.msra.mxu0 0.0
      %941 = vmatprep.subr.mxu0 0.0
      %942 = vmatpush2.xpose.msra.mxu0 0.0
      %943 = vmatprep.mubr.f32.mxu0 0.0
      %944 = vmatmul.mubr.f32.gmra.mxu0 %v875
      %v945 = vpop.f32.mrf.mxu0
      %v946 = vadd.f32 %v868, %v945
      %v947 = vpop.f32.mrf.mxu0
      %948 = vdwg.mxu0
      %vm949 = vcmask 64512
      %v950 = vsel %vm949, %v946, -inf
      %951 = vmax.xlane.f32.xlu0 %v950
      %v952 = vpop.xlane.xlu0 %951
      %v953 = vsub.f32 %v946, %v952
      %v954 = vmul.f32 %v953, 1.442695
      %v955 = vpow.pop %v954
      %v956 = vsel %vm949, %v955, 0.0
      %957 = vadd.xlane.f32.xlu0 %v956
      %v958 = vpop.xlane.xlu0 %957
      %v959 = vrcp.pop %v958
      %v960 = vmul.f32 %v955, %v959
      %961 = vrot.lane.b32.xlu0 %v856, 64
      %v962 = vpop.permute.xlu0 %961
      %v965 = vsel %vm949, %v960, 0
      %967 = vmatprep.subr.mxu0 0.0
      %968 = vmatpush1.msra.mxu0 0.0
      %969 = vmatprep.subr.mxu0 0.0
      %970 = vmatpush1.msra.mxu0 0.0
      %971 = vmatprep.subr.mxu0 0.0
      %972 = vmatpush1.msra.mxu0 0.0
      %973 = vmatprep.subr.mxu0 0.0
      %974 = vmatpush1.msra.mxu0 0.0
      %975 = vmatprep.subr.mxu0 0.0
      %976 = vmatpush1.msra.mxu0 0.0
      %977 = vmatprep.subr.mxu0 0.0
      %978 = vmatpush1.msra.mxu0 0.0
      %979 = vmatprep.subr.mxu0 0.0
      %980 = vmatpush1.msra.mxu0 0.0
      %981 = vmatprep.subr.mxu0 0.0
      %982 = vmatpush1.msra.mxu0 0.0
      %983 = vmatprep.subr.mxu0 0.0
      %984 = vmatpush1.msra.mxu0 0.0
      %985 = vmatprep.subr.mxu0 0.0
      %986 = vmatpush1.msra.mxu0 0.0
      %987 = vmatprep.subr.mxu0 0.0
      %988 = vmatpush1.msra.mxu0 0.0
      %989 = vmatprep.subr.mxu0 0.0
      %990 = vmatpush1.msra.mxu0 0.0
      %991 = vmatprep.subr.mxu0 0.0
      %992 = vmatpush1.msra.mxu0 0.0
      %993 = vmatprep.subr.mxu0 0.0
      %994 = vmatpush1.msra.mxu0 0.0
      %995 = vmatprep.subr.mxu0 0.0
      %996 = vmatpush1.msra.mxu0 0.0
      %997 = vmatprep.subr.mxu0 0.0
      %998 = vmatpush1.msra.mxu0 %v962
      %999 = vmatprep.subr.mxu0 0.0
      %1000 = vmatpush2.msra.mxu0 0.0
      %1001 = vmatprep.subr.mxu0 0.0
      %1002 = vmatpush2.msra.mxu0 0.0
      %1003 = vmatprep.subr.mxu0 0.0
      %1004 = vmatpush2.msra.mxu0 0.0
      %1005 = vmatprep.subr.mxu0 0.0
      %1006 = vmatpush2.msra.mxu0 0.0
      %1007 = vmatprep.subr.mxu0 0.0
      %1008 = vmatpush2.msra.mxu0 0.0
      %1009 = vmatprep.subr.mxu0 0.0
      %1010 = vmatpush2.msra.mxu0 0.0
      %1011 = vmatprep.subr.mxu0 0.0
      %1012 = vmatpush2.msra.mxu0 0.0
      %1013 = vmatprep.subr.mxu0 0.0
      %1014 = vmatpush2.msra.mxu0 0.0
      %1015 = vmatprep.subr.mxu0 0.0
      %1016 = vmatpush2.msra.mxu0 0.0
      %1017 = vmatprep.subr.mxu0 0.0
      %1018 = vmatpush2.msra.mxu0 0.0
      %1019 = vmatprep.subr.mxu0 0.0
      %1020 = vmatpush2.msra.mxu0 0.0
      %1021 = vmatprep.subr.mxu0 0.0
      %1022 = vmatpush2.msra.mxu0 0.0
      %1023 = vmatprep.subr.mxu0 0.0
      %1024 = vmatpush2.msra.mxu0 0.0
      %1025 = vmatprep.subr.mxu0 0.0
      %1026 = vmatpush2.msra.mxu0 0.0
      %1027 = vmatprep.subr.mxu0 0.0
      %1028 = vmatpush2.msra.mxu0 0.0
      %1029 = vmatprep.subr.mxu0 0.0
      %1030 = vmatpush2.msra.mxu0 0.0
      %1031 = vmatprep.mubr.f32.mxu0 0.0
      %1032 = vmatmul.mubr.f32.gmra.mxu0 %v965
      %v1033 = vpop.f32.mrf.mxu0
      %v1034 = vadd.f32 0.0, %v1033
      %v1035 = vpop.f32.mrf.mxu0
      %1036 = vdwg.mxu0
      %1037 = vrot.lane.b32.xlu0 %v863, 112
      %v1038 = vpop.permute.xlu0 %1037
      %1039 = vrot.lane.b32.xlu0 %v856, 80
      %v1040 = vpop.permute.xlu0 %1039
      %v1041 = vsel %vm873, %v1038, 0
      %v1043 = vsel %vm873, %v1040, 0
      %1045 = vmatprep.subr.mxu0 0.0
      %1046 = vmatpush1.xpose.msra.mxu0 0.0
      %1047 = vmatprep.subr.mxu0 0.0
      %1048 = vmatpush1.xpose.msra.mxu0 0.0
      %1049 = vmatprep.subr.mxu0 0.0
      %1050 = vmatpush1.xpose.msra.mxu0 0.0
      %1051 = vmatprep.subr.mxu0 0.0
      %1052 = vmatpush1.xpose.msra.mxu0 0.0
      %1053 = vmatprep.subr.mxu0 0.0
      %1054 = vmatpush1.xpose.msra.mxu0 0.0
      %1055 = vmatprep.subr.mxu0 0.0
      %1056 = vmatpush1.xpose.msra.mxu0 0.0
      %1057 = vmatprep.subr.mxu0 0.0
      %1058 = vmatpush1.xpose.msra.mxu0 0.0
      %1059 = vmatprep.subr.mxu0 0.0
      %1060 = vmatpush1.xpose.msra.mxu0 0.0
      %1061 = vmatprep.subr.mxu0 0.0
      %1062 = vmatpush1.xpose.msra.mxu0 0.0
      %1063 = vmatprep.subr.mxu0 0.0
      %1064 = vmatpush1.xpose.msra.mxu0 0.0
      %1065 = vmatprep.subr.mxu0 0.0
      %1066 = vmatpush1.xpose.msra.mxu0 0.0
      %1067 = vmatprep.subr.mxu0 0.0
      %1068 = vmatpush1.xpose.msra.mxu0 0.0
      %1069 = vmatprep.subr.mxu0 0.0
      %1070 = vmatpush1.xpose.msra.mxu0 0.0
      %1071 = vmatprep.subr.mxu0 0.0
      %1072 = vmatpush1.xpose.msra.mxu0 0.0
      %1073 = vmatprep.subr.mxu0 0.0
      %1074 = vmatpush1.xpose.msra.mxu0 0.0
      %1075 = vmatprep.subr.mxu0 0.0
      %1076 = vmatpush1.xpose.msra.mxu0 %v1043
      %1077 = vmatprep.subr.mxu0 0.0
      %1078 = vmatpush2.xpose.msra.mxu0 0.0
      %1079 = vmatprep.subr.mxu0 0.0
      %1080 = vmatpush2.xpose.msra.mxu0 0.0
      %1081 = vmatprep.subr.mxu0 0.0
      %1082 = vmatpush2.xpose.msra.mxu0 0.0
      %1083 = vmatprep.subr.mxu0 0.0
      %1084 = vmatpush2.xpose.msra.mxu0 0.0
      %1085 = vmatprep.subr.mxu0 0.0
      %1086 = vmatpush2.xpose.msra.mxu0 0.0
      %1087 = vmatprep.subr.mxu0 0.0
      %1088 = vmatpush2.xpose.msra.mxu0 0.0
      %1089 = vmatprep.subr.mxu0 0.0
      %1090 = vmatpush2.xpose.msra.mxu0 0.0
      %1091 = vmatprep.subr.mxu0 0.0
      %1092 = vmatpush2.xpose.msra.mxu0 0.0
      %1093 = vmatprep.subr.mxu0 0.0
      %1094 = vmatpush2.xpose.msra.mxu0 0.0
      %1095 = vmatprep.subr.mxu0 0.0
      %1096 = vmatpush2.xpose.msra.mxu0 0.0
      %1097 = vmatprep.subr.mxu0 0.0
      %1098 = vmatpush2.xpose.msra.mxu0 0.0
      %1099 = vmatprep.subr.mxu0 0.0
      %1100 = vmatpush2.xpose.msra.mxu0 0.0
      %1101 = vmatprep.subr.mxu0 0.0
      %1102 = vmatpush2.xpose.msra.mxu0 0.0
      %1103 = vmatprep.subr.mxu0 0.0
      %1104 = vmatpush2.xpose.msra.mxu0 0.0
      %1105 = vmatprep.subr.mxu0 0.0
      %1106 = vmatpush2.xpose.msra.mxu0 0.0
      %1107 = vmatprep.subr.mxu0 0.0
      %1108 = vmatpush2.xpose.msra.mxu0 0.0
      %1109 = vmatprep.mubr.f32.mxu0 0.0
      %1110 = vmatmul.mubr.f32.gmra.mxu0 %v1041
      %v1111 = vpop.f32.mrf.mxu0
      %v1112 = vadd.f32 %v868, %v1111
      %v1113 = vpop.f32.mrf.mxu0
      %1114 = vdwg.mxu0
      %v1115 = vsel %vm949, %v1112, -inf
      %1116 = vmax.xlane.f32.xlu0 %v1115
      %v1117 = vpop.xlane.xlu0 %1116
      %v1118 = vsub.f32 %v1112, %v1117
      %v1119 = vmul.f32 %v1118, 1.442695
      %v1120 = vpow.pop %v1119
      %v1121 = vsel %vm949, %v1120, 0.0
      %1122 = vadd.xlane.f32.xlu0 %v1121
      %v1123 = vpop.xlane.xlu0 %1122
      %v1124 = vrcp.pop %v1123
      %v1125 = vmul.f32 %v1120, %v1124
      %1126 = vrot.lane.b32.xlu0 %v856, 48
      %v1127 = vpop.permute.xlu0 %1126
      %v1130 = vsel %vm949, %v1125, 0
      %1132 = vmatprep.subr.mxu0 0.0
      %1133 = vmatpush1.msra.mxu0 0.0
      %1134 = vmatprep.subr.mxu0 0.0
      %1135 = vmatpush1.msra.mxu0 0.0
      %1136 = vmatprep.subr.mxu0 0.0
      %1137 = vmatpush1.msra.mxu0 0.0
      %1138 = vmatprep.subr.mxu0 0.0
      %1139 = vmatpush1.msra.mxu0 0.0
      %1140 = vmatprep.subr.mxu0 0.0
      %1141 = vmatpush1.msra.mxu0 0.0
      %1142 = vmatprep.subr.mxu0 0.0
      %1143 = vmatpush1.msra.mxu0 0.0
      %1144 = vmatprep.subr.mxu0 0.0
      %1145 = vmatpush1.msra.mxu0 0.0
      %1146 = vmatprep.subr.mxu0 0.0
      %1147 = vmatpush1.msra.mxu0 0.0
      %1148 = vmatprep.subr.mxu0 0.0
      %1149 = vmatpush1.msra.mxu0 0.0
      %1150 = vmatprep.subr.mxu0 0.0
      %1151 = vmatpush1.msra.mxu0 0.0
      %1152 = vmatprep.subr.mxu0 0.0
      %1153 = vmatpush1.msra.mxu0 0.0
      %1154 = vmatprep.subr.mxu0 0.0
      %1155 = vmatpush1.msra.mxu0 0.0
      %1156 = vmatprep.subr.mxu0 0.0
      %1157 = vmatpush1.msra.mxu0 0.0
      %1158 = vmatprep.subr.mxu0 0.0
      %1159 = vmatpush1.msra.mxu0 0.0
      %1160 = vmatprep.subr.mxu0 0.0
      %1161 = vmatpush1.msra.mxu0 0.0
      %1162 = vmatprep.subr.mxu0 0.0
      %1163 = vmatpush1.msra.mxu0 %v1127
      %1164 = vmatprep.subr.mxu0 0.0
      %1165 = vmatpush2.msra.mxu0 0.0
      %1166 = vmatprep.subr.mxu0 0.0
      %1167 = vmatpush2.msra.mxu0 0.0
      %1168 = vmatprep.subr.mxu0 0.0
      %1169 = vmatpush2.msra.mxu0 0.0
      %1170 = vmatprep.subr.mxu0 0.0
      %1171 = vmatpush2.msra.mxu0 0.0
      %1172 = vmatprep.subr.mxu0 0.0
      %1173 = vmatpush2.msra.mxu0 0.0
      %1174 = vmatprep.subr.mxu0 0.0
      %1175 = vmatpush2.msra.mxu0 0.0
      %1176 = vmatprep.subr.mxu0 0.0
      %1177 = vmatpush2.msra.mxu0 0.0
      %1178 = vmatprep.subr.mxu0 0.0
      %1179 = vmatpush2.msra.mxu0 0.0
      %1180 = vmatprep.subr.mxu0 0.0
      %1181 = vmatpush2.msra.mxu0 0.0
      %1182 = vmatprep.subr.mxu0 0.0
      %1183 = vmatpush2.msra.mxu0 0.0
      %1184 = vmatprep.subr.mxu0 0.0
      %1185 = vmatpush2.msra.mxu0 0.0
      %1186 = vmatprep.subr.mxu0 0.0
      %1187 = vmatpush2.msra.mxu0 0.0
      %1188 = vmatprep.subr.mxu0 0.0
      %1189 = vmatpush2.msra.mxu0 0.0
      %1190 = vmatprep.subr.mxu0 0.0
      %1191 = vmatpush2.msra.mxu0 0.0
      %1192 = vmatprep.subr.mxu0 0.0
      %1193 = vmatpush2.msra.mxu0 0.0
      %1194 = vmatprep.subr.mxu0 0.0
      %1195 = vmatpush2.msra.mxu0 0.0
      %1196 = vmatprep.mubr.f32.mxu0 0.0
      %1197 = vmatmul.mubr.f32.gmra.mxu0 %v1130
      %v1198 = vpop.f32.mrf.mxu0
      %v1199 = vadd.f32 0.0, %v1198
      %v1200 = vpop.f32.mrf.mxu0
      %1201 = vdwg.mxu0
      %v1203 = vsel %vm873, %v1199, 0
      %1205 = vmatprep.subr.mxu0 0.0
      %1206 = vmatpush1.msra.mxu0 0.0
      %1207 = vmatprep.subr.mxu0 0.0
      %1208 = vmatpush1.msra.mxu0 0.0
      %1209 = vmatprep.subr.mxu0 0.0
      %1210 = vmatpush1.msra.mxu0 0.0
      %1211 = vmatprep.subr.mxu0 0.0
      %1212 = vmatpush1.msra.mxu0 0.0
      %1213 = vmatprep.subr.mxu0 0.0
      %1214 = vmatpush1.msra.mxu0 0.0
      %1215 = vmatprep.subr.mxu0 0.0
      %1216 = vmatpush1.msra.mxu0 0.0
      %1217 = vmatprep.subr.mxu0 0.0
      %1218 = vmatpush1.msra.mxu0 0.0
      %1219 = vmatprep.subr.mxu0 0.0
      %1220 = vmatpush1.msra.mxu0 0.0
      %1221 = vmatprep.subr.mxu0 0.0
      %1222 = vmatpush1.msra.mxu0 0.0
      %1223 = vmatprep.subr.mxu0 0.0
      %1224 = vmatpush1.msra.mxu0 0.0
      %1225 = vmatprep.subr.mxu0 0.0
      %1226 = vmatpush1.msra.mxu0 0.0
      %1227 = vmatprep.subr.mxu0 0.0
      %1228 = vmatpush1.msra.mxu0 0.0
      %1229 = vmatprep.subr.mxu0 0.0
      %1230 = vmatpush1.msra.mxu0 0.0
      %1231 = vmatprep.subr.mxu0 0.0
      %1232 = vmatpush1.msra.mxu0 0.0
      %1233 = vmatprep.subr.mxu0 0.0
      %1234 = vmatpush1.msra.mxu0 %v862
      %1235 = vmatprep.subr.mxu0 0.0
      %1236 = vmatpush1.msra.mxu0 %v861
      %1237 = vmatprep.subr.mxu0 0.0
      %1238 = vmatpush2.msra.mxu0 0.0
      %1239 = vmatprep.subr.mxu0 0.0
      %1240 = vmatpush2.msra.mxu0 0.0
      %1241 = vmatprep.subr.mxu0 0.0
      %1242 = vmatpush2.msra.mxu0 0.0
      %1243 = vmatprep.subr.mxu0 0.0
      %1244 = vmatpush2.msra.mxu0 0.0
      %1245 = vmatprep.subr.mxu0 0.0
      %1246 = vmatpush2.msra.mxu0 0.0
      %1247 = vmatprep.subr.mxu0 0.0
      %1248 = vmatpush2.msra.mxu0 0.0
      %1249 = vmatprep.subr.mxu0 0.0
      %1250 = vmatpush2.msra.mxu0 0.0
      %1251 = vmatprep.subr.mxu0 0.0
      %1252 = vmatpush2.msra.mxu0 0.0
      %1253 = vmatprep.subr.mxu0 0.0
      %1254 = vmatpush2.msra.mxu0 0.0
      %1255 = vmatprep.subr.mxu0 0.0
      %1256 = vmatpush2.msra.mxu0 0.0
      %1257 = vmatprep.subr.mxu0 0.0
      %1258 = vmatpush2.msra.mxu0 0.0
      %1259 = vmatprep.subr.mxu0 0.0
      %1260 = vmatpush2.msra.mxu0 0.0
      %1261 = vmatprep.subr.mxu0 0.0
      %1262 = vmatpush2.msra.mxu0 0.0
      %1263 = vmatprep.subr.mxu0 0.0
      %1264 = vmatpush2.msra.mxu0 0.0
      %1265 = vmatprep.subr.mxu0 0.0
      %1266 = vmatpush2.msra.mxu0 0.0
      %1267 = vmatprep.subr.mxu0 0.0
      %1268 = vmatpush2.msra.mxu0 0.0
      %1269 = vmatprep.mubr.f32.mxu0 0.0
      %1270 = vmatmul.mubr.f32.gmra.mxu0 %v1203
      %v1271 = vpop.f32.mrf.mxu0
      %v1272 = vadd.f32 0.0, %v1271
      %v1273 = vpop.f32.mrf.mxu0
      %1274 = vdwg.mxu0
      %v1276 = vsel %vm873, %v1034, 0
      %1278 = vmatprep.subr.mxu0 0.0
      %1279 = vmatpush1.msra.mxu0 0.0
      %1280 = vmatprep.subr.mxu0 0.0
      %1281 = vmatpush1.msra.mxu0 0.0
      %1282 = vmatprep.subr.mxu0 0.0
      %1283 = vmatpush1.msra.mxu0 0.0
      %1284 = vmatprep.subr.mxu0 0.0
      %1285 = vmatpush1.msra.mxu0 0.0
      %1286 = vmatprep.subr.mxu0 0.0
      %1287 = vmatpush1.msra.mxu0 0.0
      %1288 = vmatprep.subr.mxu0 0.0
      %1289 = vmatpush1.msra.mxu0 0.0
      %1290 = vmatprep.subr.mxu0 0.0
      %1291 = vmatpush1.msra.mxu0 0.0
      %1292 = vmatprep.subr.mxu0 0.0
      %1293 = vmatpush1.msra.mxu0 0.0
      %1294 = vmatprep.subr.mxu0 0.0
      %1295 = vmatpush1.msra.mxu0 0.0
      %1296 = vmatprep.subr.mxu0 0.0
      %1297 = vmatpush1.msra.mxu0 0.0
      %1298 = vmatprep.subr.mxu0 0.0
      %1299 = vmatpush1.msra.mxu0 0.0
      %1300 = vmatprep.subr.mxu0 0.0
      %1301 = vmatpush1.msra.mxu0 0.0
      %1302 = vmatprep.subr.mxu0 0.0
      %1303 = vmatpush1.msra.mxu0 0.0
      %1304 = vmatprep.subr.mxu0 0.0
      %1305 = vmatpush1.msra.mxu0 0.0
      %1306 = vmatprep.subr.mxu0 0.0
      %1307 = vmatpush1.msra.mxu0 %v860
      %1308 = vmatprep.subr.mxu0 0.0
      %1309 = vmatpush1.msra.mxu0 %v859
      %1310 = vmatprep.subr.mxu0 0.0
      %1311 = vmatpush2.msra.mxu0 0.0
      %1312 = vmatprep.subr.mxu0 0.0
      %1313 = vmatpush2.msra.mxu0 0.0
      %1314 = vmatprep.subr.mxu0 0.0
      %1315 = vmatpush2.msra.mxu0 0.0
      %1316 = vmatprep.subr.mxu0 0.0
      %1317 = vmatpush2.msra.mxu0 0.0
      %1318 = vmatprep.subr.mxu0 0.0
      %1319 = vmatpush2.msra.mxu0 0.0
      %1320 = vmatprep.subr.mxu0 0.0
      %1321 = vmatpush2.msra.mxu0 0.0
      %1322 = vmatprep.subr.mxu0 0.0
      %1323 = vmatpush2.msra.mxu0 0.0
      %1324 = vmatprep.subr.mxu0 0.0
      %1325 = vmatpush2.msra.mxu0 0.0
      %1326 = vmatprep.subr.mxu0 0.0
      %1327 = vmatpush2.msra.mxu0 0.0
      %1328 = vmatprep.subr.mxu0 0.0
      %1329 = vmatpush2.msra.mxu0 0.0
      %1330 = vmatprep.subr.mxu0 0.0
      %1331 = vmatpush2.msra.mxu0 0.0
      %1332 = vmatprep.subr.mxu0 0.0
      %1333 = vmatpush2.msra.mxu0 0.0
      %1334 = vmatprep.subr.mxu0 0.0
      %1335 = vmatpush2.msra.mxu0 0.0
      %1336 = vmatprep.subr.mxu0 0.0
      %1337 = vmatpush2.msra.mxu0 0.0
      %1338 = vmatprep.subr.mxu0 0.0
      %1339 = vmatpush2.msra.mxu0 0.0
      %1340 = vmatprep.subr.mxu0 0.0
      %1341 = vmatpush2.msra.mxu0 0.0
      %1342 = vmatprep.mubr.f32.mxu0 0.0
      %1343 = vmatmul.mubr.f32.gmra.mxu0 %v1276
      %v1344 = vpop.f32.mrf.mxu0
      %v1345 = vadd.f32 %v1272, %v1344
      %v1346 = vpop.f32.mrf.mxu0
      %1347 = vdwg.mxu0
      %v1348 = vld [vmem:[%s702] sm:$0x1]
      %v1350 = vlaneseq
      %v1351 = vshrl.u32 %v1350, 7
      %v1352 = vsub.s32 0, %v1351
      %v1353 = vrot.slane %v1348, %v1352
      %v1355 = vadd.f32 %v1345, %v1353
      %v1356 = vadd.f32 %v1355, %v772
      %v1357 = vld [vmem:[%s705] sm:$0x1]
      %v1358 = vld [vmem:[%s708] sm:$0x1]
      %v1359 = vsel %vm785, %v1356, 0.0
      %1360 = vadd.xlane.f32.xlu0 %v1359
      %v1361 = vpop.xlane.xlu0 %1360
      %v1362 = vrcp.pop 32.0
      %v1363 = vmul.f32 %v1361, %v1362
      %v1364 = vsub.f32 %v1356, %v1363
      %v1365 = vmul.f32 %v1364, %v1364
      %v1366 = vsel %vm785, %v1365, 0.0
      %1367 = vadd.xlane.f32.xlu0 %v1366
      %v1368 = vpop.xlane.xlu0 %1367
      %v1369 = vmul.f32 %v1368, %v1362
      %v1370 = vadd.f32 %v1369, 1e-12
      %v1371 = vrsqrt.pop %v1370
      %v1372 = vmul.f32 %v1364, %v1371
      %v1374 = vlaneseq
      %v1375 = vshrl.u32 %v1374, 7
      %v1376 = vsub.s32 0, %v1375
      %v1377 = vrot.slane %v1357, %v1376
      %v1379 = vmul.f32 %v1372, %v1377
      %v1381 = vlaneseq
      %v1382 = vshrl.u32 %v1381, 7
      %v1383 = vsub.s32 0, %v1382
      %v1384 = vrot.slane %v1358, %v1383
      %v1386 = vadd.f32 %v1379, %v1384
      %v1387 = vld [vmem:[%s713] sm:$0xff]
      %v1388 = vld [vmem:[%s713 + $0x8] sm:$0xff]
      %v1389 = vld [vmem:[%s713 + $0x10] sm:$0xff]
      %v1390 = vld [vmem:[%s713 + $0x18] sm:$0xff]
      %v1391 = vld [vmem:[%s716] sm:$0x1]
      %v1393 = vlaneseq
      %v1394 = vshrl.u32 %v1393, 7
      %v1395 = vsub.s32 0, %v1394
      %v1396 = vrot.slane %v1391, %v1395
      %v1399 = vsel %vm785, %v1386, 0
      %1401 = vmatprep.subr.mxu0 0.0
      %1402 = vmatpush1.msra.mxu0 0.0
      %1403 = vmatprep.subr.mxu0 0.0
      %1404 = vmatpush1.msra.mxu0 0.0
      %1405 = vmatprep.subr.mxu0 0.0
      %1406 = vmatpush1.msra.mxu0 0.0
      %1407 = vmatprep.subr.mxu0 0.0
      %1408 = vmatpush1.msra.mxu0 0.0
      %1409 = vmatprep.subr.mxu0 0.0
      %1410 = vmatpush1.msra.mxu0 0.0
      %1411 = vmatprep.subr.mxu0 0.0
      %1412 = vmatpush1.msra.mxu0 0.0
      %1413 = vmatprep.subr.mxu0 0.0
      %1414 = vmatpush1.msra.mxu0 0.0
      %1415 = vmatprep.subr.mxu0 0.0
      %1416 = vmatpush1.msra.mxu0 0.0
      %1417 = vmatprep.subr.mxu0 0.0
      %1418 = vmatpush1.msra.mxu0 0.0
      %1419 = vmatprep.subr.mxu0 0.0
      %1420 = vmatpush1.msra.mxu0 0.0
      %1421 = vmatprep.subr.mxu0 0.0
      %1422 = vmatpush1.msra.mxu0 0.0
      %1423 = vmatprep.subr.mxu0 0.0
      %1424 = vmatpush1.msra.mxu0 0.0
      %1425 = vmatprep.subr.mxu0 0.0
      %1426 = vmatpush1.msra.mxu0 %v1390
      %1427 = vmatprep.subr.mxu0 0.0
      %1428 = vmatpush1.msra.mxu0 %v1389
      %1429 = vmatprep.subr.mxu0 0.0
      %1430 = vmatpush1.msra.mxu0 %v1388
      %1431 = vmatprep.subr.mxu0 0.0
      %1432 = vmatpush1.msra.mxu0 %v1387
      %1433 = vmatprep.subr.mxu0 0.0
      %1434 = vmatpush2.msra.mxu0 0.0
      %1435 = vmatprep.subr.mxu0 0.0
      %1436 = vmatpush2.msra.mxu0 0.0
      %1437 = vmatprep.subr.mxu0 0.0
      %1438 = vmatpush2.msra.mxu0 0.0
      %1439 = vmatprep.subr.mxu0 0.0
      %1440 = vmatpush2.msra.mxu0 0.0
      %1441 = vmatprep.subr.mxu0 0.0
      %1442 = vmatpush2.msra.mxu0 0.0
      %1443 = vmatprep.subr.mxu0 0.0
      %1444 = vmatpush2.msra.mxu0 0.0
      %1445 = vmatprep.subr.mxu0 0.0
      %1446 = vmatpush2.msra.mxu0 0.0
      %1447 = vmatprep.subr.mxu0 0.0
      %1448 = vmatpush2.msra.mxu0 0.0
      %1449 = vmatprep.subr.mxu0 0.0
      %1450 = vmatpush2.msra.mxu0 0.0
      %1451 = vmatprep.subr.mxu0 0.0
      %1452 = vmatpush2.msra.mxu0 0.0
      %1453 = vmatprep.subr.mxu0 0.0
      %1454 = vmatpush2.msra.mxu0 0.0
      %1455 = vmatprep.subr.mxu0 0.0
      %1456 = vmatpush2.msra.mxu0 0.0
      %1457 = vmatprep.subr.mxu0 0.0
      %1458 = vmatpush2.msra.mxu0 0.0
      %1459 = vmatprep.subr.mxu0 0.0
      %1460 = vmatpush2.msra.mxu0 0.0
      %1461 = vmatprep.subr.mxu0 0.0
      %1462 = vmatpush2.msra.mxu0 0.0
      %1463 = vmatprep.subr.mxu0 0.0
      %1464 = vmatpush2.msra.mxu0 0.0
      %1465 = vmatprep.mubr.f32.mxu0 0.0
      %1466 = vmatmul.mubr.f32.gmra.mxu0 %v1399
      %v1467 = vpop.f32.mrf.mxu0
      %v1468 = vadd.f32 %v1396, %v1467
      %v1469 = vpop.f32.mrf.mxu0
      %1470 = vdwg.mxu0
      %v1471 = vmul.f32 %v1468, %v1468
      %v1472 = vmul.f32 %v1468, %v1471
      %v1473 = vmul.f32 %v1472, 0.044715
      %v1474 = vadd.f32 %v1468, %v1473
      %v1475 = vmul.f32 %v1474, 0.7978846
      %v1476 = vtanh.pop %v1475
      %v1477 = vadd.f32 %v1476, 1.0
      %v1478 = vmul.f32 %v1477, 0.5
      %v1479 = vmul.f32 %v1468, %v1478
      %v1480 = vld [vmem:[%s721] sm:$0xff]
      %v1481 = vld [vmem:[%s721 + $0x8] sm:$0xff]
      %v1482 = vld [vmem:[%s721 + $0x10] sm:$0xff]
      %v1483 = vld [vmem:[%s721 + $0x18] sm:$0xff]
      %v1484 = vld [vmem:[%s721 + $0x20] sm:$0xff]
      %v1485 = vld [vmem:[%s721 + $0x28] sm:$0xff]
      %v1486 = vld [vmem:[%s721 + $0x30] sm:$0xff]
      %v1487 = vld [vmem:[%s721 + $0x38] sm:$0xff]
      %v1488 = vld [vmem:[%s724] sm:$0x1]
      %v1490 = vlaneseq
      %v1491 = vshrl.u32 %v1490, 7
      %v1492 = vsub.s32 0, %v1491
      %v1493 = vrot.slane %v1488, %v1492
      %vm1495 = vcmask 523264
      %v1497 = vsel %vm1495, %v1479, 0
      %1499 = vmatprep.subr.mxu0 0.0
      %1500 = vmatpush1.msra.mxu0 0.0
      %1501 = vmatprep.subr.mxu0 0.0
      %1502 = vmatpush1.msra.mxu0 0.0
      %1503 = vmatprep.subr.mxu0 0.0
      %1504 = vmatpush1.msra.mxu0 0.0
      %1505 = vmatprep.subr.mxu0 0.0
      %1506 = vmatpush1.msra.mxu0 0.0
      %1507 = vmatprep.subr.mxu0 0.0
      %1508 = vmatpush1.msra.mxu0 0.0
      %1509 = vmatprep.subr.mxu0 0.0
      %1510 = vmatpush1.msra.mxu0 0.0
      %1511 = vmatprep.subr.mxu0 0.0
      %1512 = vmatpush1.msra.mxu0 0.0
      %1513 = vmatprep.subr.mxu0 0.0
      %1514 = vmatpush1.msra.mxu0 0.0
      %1515 = vmatprep.subr.mxu0 0.0
      %1516 = vmatpush1.msra.mxu0 %v1487
      %1517 = vmatprep.subr.mxu0 0.0
      %1518 = vmatpush1.msra.mxu0 %v1486
      %1519 = vmatprep.subr.mxu0 0.0
      %1520 = vmatpush1.msra.mxu0 %v1485
      %1521 = vmatprep.subr.mxu0 0.0
      %1522 = vmatpush1.msra.mxu0 %v1484
      %1523 = vmatprep.subr.mxu0 0.0
      %1524 = vmatpush1.msra.mxu0 %v1483
      %1525 = vmatprep.subr.mxu0 0.0
      %1526 = vmatpush1.msra.mxu0 %v1482
      %1527 = vmatprep.subr.mxu0 0.0
      %1528 = vmatpush1.msra.mxu0 %v1481
      %1529 = vmatprep.subr.mxu0 0.0
      %1530 = vmatpush1.msra.mxu0 %v1480
      %1531 = vmatprep.subr.mxu0 0.0
      %1532 = vmatpush2.msra.mxu0 0.0
      %1533 = vmatprep.subr.mxu0 0.0
      %1534 = vmatpush2.msra.mxu0 0.0
      %1535 = vmatprep.subr.mxu0 0.0
      %1536 = vmatpush2.msra.mxu0 0.0
      %1537 = vmatprep.subr.mxu0 0.0
      %1538 = vmatpush2.msra.mxu0 0.0
      %1539 = vmatprep.subr.mxu0 0.0
      %1540 = vmatpush2.msra.mxu0 0.0
      %1541 = vmatprep.subr.mxu0 0.0
      %1542 = vmatpush2.msra.mxu0 0.0
      %1543 = vmatprep.subr.mxu0 0.0
      %1544 = vmatpush2.msra.mxu0 0.0
      %1545 = vmatprep.subr.mxu0 0.0
      %1546 = vmatpush2.msra.mxu0 0.0
      %1547 = vmatprep.subr.mxu0 0.0
      %1548 = vmatpush2.msra.mxu0 0.0
      %1549 = vmatprep.subr.mxu0 0.0
      %1550 = vmatpush2.msra.mxu0 0.0
      %1551 = vmatprep.subr.mxu0 0.0
      %1552 = vmatpush2.msra.mxu0 0.0
      %1553 = vmatprep.subr.mxu0 0.0
      %1554 = vmatpush2.msra.mxu0 0.0
      %1555 = vmatprep.subr.mxu0 0.0
      %1556 = vmatpush2.msra.mxu0 0.0
      %1557 = vmatprep.subr.mxu0 0.0
      %1558 = vmatpush2.msra.mxu0 0.0
      %1559 = vmatprep.subr.mxu0 0.0
      %1560 = vmatpush2.msra.mxu0 0.0
      %1561 = vmatprep.subr.mxu0 0.0
      %1562 = vmatpush2.msra.mxu0 0.0
      %1563 = vmatprep.mubr.f32.mxu0 0.0
      %1564 = vmatmul.mubr.f32.gmra.mxu0 %v1497
      %v1565 = vpop.f32.mrf.mxu0
      %v1566 = vadd.f32 %v1493, %v1565
      %v1567 = vpop.f32.mrf.mxu0
      %1568 = vdwg.mxu0
      %v1569 = vadd.f32 %v1566, %v1386
      %v1570 = vld [vmem:[%s727] sm:$0x1]
      %v1571 = vld [vmem:[%s730] sm:$0x1]
      %v1572 = vsel %vm785, %v1569, 0.0
      %1573 = vadd.xlane.f32.xlu0 %v1572
      %v1574 = vpop.xlane.xlu0 %1573
      %v1575 = vmul.f32 %v1574, %v1362
      %v1576 = vsub.f32 %v1569, %v1575
      %v1577 = vmul.f32 %v1576, %v1576
      %v1578 = vsel %vm785, %v1577, 0.0
      %1579 = vadd.xlane.f32.xlu0 %v1578
      %v1580 = vpop.xlane.xlu0 %1579
      %v1581 = vmul.f32 %v1580, %v1362
      %v1582 = vadd.f32 %v1581, 1e-12
      %v1583 = vrsqrt.pop %v1582
      %v1584 = vmul.f32 %v1576, %v1583
      %v1586 = vlaneseq
      %v1587 = vshrl.u32 %v1586, 7
      %v1588 = vsub.s32 0, %v1587
      %v1589 = vrot.slane %v1570, %v1588
      %v1591 = vmul.f32 %v1584, %v1589
      %v1593 = vlaneseq
      %v1594 = vshrl.u32 %v1593, 7
      %v1595 = vsub.s32 0, %v1594
      %v1596 = vrot.slane %v1571, %v1595
      %v1598 = vadd.f32 %v1591, %v1596
      %1599 = vst.msk [vmem:[%s734] sm:$0xff] %vm785, %v1598
      %p1600 = scmp.lt.s32.totalorder %s31, 1
      %s1601 = scalar_select %p1600, %s31, 1
      %s1602 = smul.addr %s1601, 8
      %s1603 = scalar_lea.vmem %s16, %s1602
      // Predicated region
      $region89: #{forward.1} parent=83 // pred_check
        %p1604 = pneg %p463
      $region90: #{forward.1} parent=83 // pred_check_branch
        %1606 = sbr.rel (%p1604) target = $region92
      $region91: #{forward.1} parent=83 // pred_region
        _
      $region92: #{forward.1} parent=83 // pred_fallthru
        _
    $region84: #{forward.1} parent=5 // pred_fallthru
      _
    %p1607 = scmp.le.s32.totalorder 2, %s22
    // Predicated region
    $region93: #{forward.1} parent=5 // pred_check
      %p1608 = pneg %p1607
    $region94: #{forward.1} parent=5 // pred_check_branch
      %1610 = sbr.rel (%p1608) target = $region96
    $region95: #{forward.1} parent=5 // pred_region
      %s1611 = ssub.s32 %s22, 2
      // Predicated region
      $region97: #{forward.1} parent=95 // pred_check
        %p1612 = pneg %p469
      $region98: #{forward.1} parent=95 // pred_check_branch
        %1614 = sbr.rel (%p1612) target = $region100
      $region99: #{forward.1} parent=95 // pred_region
        %p1615 = scmp.lt.s32.totalorder %s33, 1
        %s1616 = scalar_select %p1615, %s33, 1
        %s1617 = smul.addr %s1616, 8
        %s1618 = scalar_lea.vmem %s16, %s1617
      $region100: #{forward.1} parent=95 // pred_fallthru
        _
    $region96: #{forward.1} parent=5 // pred_fallthru
      _
  $region6: #{forward.1} parent=0 // loop_footer
    %s26 = sadd.s32 1, %s22
  $region7: #{forward.1} parent=0 // loop_footer_branch
    %21 = sbr.rel target = $region3
  $region8: #{forward.1} parent=0 // loop_exit
    _

</llo_original>
